<compile_context>
chip_gen: v7x
topology: tpu7x:2x2x1
jax: 0.10.0
libtpu: 0.0.40
codegen_flags: <defaults>
</compile_context>

<pallas_src>
import jax
import jax.numpy as jnp
from jax.experimental import pallas as pl
from jax.experimental.pallas import tpu as pltpu

LANE = 128


# --------------------------------------------------------------------------
# Kernel
# --------------------------------------------------------------------------
def _fusion_head_kernel(
    f_ref, e_ref,
    wpv_ref, cpv_ref,              # proj_visual: BN-scale-folded weight, bias*scale+shift
    wpt_ref, cpt_ref,              # proj_text
    wav_ref, bav_ref,              # layer_attn_visual (raw bias, no BN)
    wat_ref, bat_ref,              # layer_attn_text
    wfcv_ref, wfce_ref, cfc_ref,   # fc_as_self_attn split row-wise (BN folded)
    wcls_ref, bcls_ref,            # cls_layer (columns padded to a lane multiple)
    out_ref,
):
    f = f_ref[...]
    e = e_ref[...]

    def self_attn(x):
        # softmax(x @ x.T) @ x over the BATCH axis, exactly as the PyTorch module.
        # dot_general contracts the last dims of both operands -> no transpose.
        s = jax.lax.dot_general(x, x, (((1,), (1,)), ((), ())),
                                preferred_element_type=jnp.float32)      # [B, B]
        m = jnp.max(s, axis=-1, keepdims=True)
        p = jnp.exp(s - m)
        inv = pl.reciprocal(jnp.sum(p, axis=-1, keepdims=True), approx=True)
        return jnp.dot(p * inv, x, preferred_element_type=jnp.float32)   # [B, D]

    f_sa = self_attn(f)                       # [B, V]
    e_sa = self_attn(e)                       # [B, T]
    f_sa_b = f_sa.astype(jnp.bfloat16)
    e_sa_b = e_sa.astype(jnp.bfloat16)

    # f_i_tilde = relu(BN(proj_visual(f_sa)))  -- BN folded into wpv / cpv
    f_tilde = jnp.maximum(
        jnp.dot(f_sa_b, wpv_ref[...], preferred_element_type=jnp.float32)
        + cpv_ref[...], 0.0)
    # e_i_tilde = relu(BN(proj_text(e_sa)))
    e_tilde = jnp.maximum(
        jnp.dot(e_sa_b, wpt_ref[...], preferred_element_type=jnp.float32)
        + cpt_ref[...], 0.0)

    # alpha_v = sigmoid(layer_attn_text(e_sa)); alpha_e = sigmoid(layer_attn_visual(f_sa))
    alpha_v = jax.nn.sigmoid(
        jnp.dot(e_sa_b, wat_ref[...], preferred_element_type=jnp.float32) + bat_ref[...])
    alpha_e = jax.nn.sigmoid(
        jnp.dot(f_sa_b, wav_ref[...], preferred_element_type=jnp.float32) + bav_ref[...])

    masked_v = (alpha_v * f_tilde).astype(jnp.bfloat16)
    masked_e = (alpha_e * e_tilde).astype(jnp.bfloat16)

    # relu(self_attn_bn(fc_as_self_attn(cat(masked_v, masked_e))))
    # concat eliminated: two MXU calls share one f32 accumulator.
    h = jnp.maximum(
        jnp.dot(masked_v, wfcv_ref[...], preferred_element_type=jnp.float32)
        + jnp.dot(masked_e, wfce_ref[...], preferred_element_type=jnp.float32)
        + cfc_ref[...], 0.0)

    # cls_layer (dropout = identity in eval mode)
    out_ref[...] = (jnp.dot(h.astype(jnp.bfloat16), wcls_ref[...],
                            preferred_element_type=jnp.float32) + bcls_ref[...])


# --------------------------------------------------------------------------
# Wrapper: padding, BN folding, bf16 casting, pallas_call
# --------------------------------------------------------------------------
def _pad_cols(x, mult=LANE):
    pad = (-x.shape[-1]) % mult
    if pad == 0:
        return x
    return jnp.pad(x, [(0, 0)] * (x.ndim - 1) + [(0, pad)])


def _pad_rows(x, mult=LANE):
    pad = (-x.shape[0]) % mult
    if pad == 0:
        return x
    return jnp.pad(x, [(0, pad)] + [(0, 0)] * (x.ndim - 1))


def _fold_bn(gamma, beta, mean, var, eps=1e-5):
    scale = gamma / jnp.sqrt(var + eps)
    shift = beta - mean * scale
    return scale, shift


def prepare_params(p):
    """Fold BN, split wfc, cast weights to bf16, zero-pad lanes to 128."""
    sv, hv = _fold_bn(p["bn_v_gamma"], p["bn_v_beta"], p["bn_v_mean"], p["bn_v_var"])
    st, ht = _fold_bn(p["bn_t_gamma"], p["bn_t_beta"], p["bn_t_mean"], p["bn_t_var"])
    sj, hj = _fold_bn(p["bn_j_gamma"], p["bn_j_beta"], p["bn_j_mean"], p["bn_j_var"])

    P = p["wpv"].shape[1]

    def wb16(w):
        return _pad_rows(_pad_cols(w)).astype(jnp.bfloat16)

    def cvec(c):
        return _pad_cols(c[None, :]).astype(jnp.float32)

    wfc_s = p["wfc"] * sj[None, :]                 # BN scale folded into wfc

    return {
        "wpv": wb16(p["wpv"] * sv[None, :]), "cpv": cvec(p["bpv"] * sv + hv),
        "wpt": wb16(p["wpt"] * st[None, :]), "cpt": cvec(p["bpt"] * st + ht),
        "wav": wb16(p["wav"]), "bav": cvec(p["bav"]),
        "wat": wb16(p["wat"]), "bat": cvec(p["bat"]),
        "wfcv": wb16(wfc_s[:P, :]), "wfce": wb16(wfc_s[P:, :]),
        "cfc": cvec(p["bfc"] * sj + hj),
        "wcls": wb16(p["wcls"]), "bcls": cvec(p["bcls"]),
        "num_class": int(p["wcls"].shape[1]),
    }


def fusion_head(f_i, e_i, prep):
    """f_i: [B, V], e_i: [B, T] -> logits [B, num_class]."""
    f = _pad_cols(f_i.astype(jnp.float32))
    e = _pad_cols(e_i.astype(jnp.float32))
    order = ("wpv", "cpv", "wpt", "cpt", "wav", "bav", "wat", "bat",
             "wfcv", "wfce", "cfc", "wcls", "bcls")
    args = (f, e) + tuple(prep[k] for k in order)

    B = f.shape[0]
    cp = prep["wcls"].shape[1]                     # lane-padded class dim
    vmem = pl.BlockSpec(memory_space=pltpu.MemorySpace.VMEM)

    out = pl.pallas_call(
        _fusion_head_kernel,
        out_shape=jax.ShapeDtypeStruct((B, cp), jnp.float32),
        in_specs=[vmem] * len(args),
        out_specs=vmem,
    )(*args)
    return out[:, :prep["num_class"]]


# --------------------------------------------------------------------------
# Parameter construction + plain-JAX reference (for validation)
# --------------------------------------------------------------------------
def make_params(key, dim_visual, dim_text, dim_proj, num_class):
    ks = jax.random.split(key, 15)
    n = lambda k, shape, s=0.02: (s * jax.random.normal(k, shape)).astype(jnp.float32)

    def bn(k, d, prefix):
        k1, k2, k3, k4 = jax.random.split(k, 4)
        return {
            prefix + "_gamma": (1.0 + 0.01 * jax.random.normal(k1, (d,))).astype(jnp.float32),
            prefix + "_beta": (0.01 * jax.random.normal(k2, (d,))).astype(jnp.float32),
            prefix + "_mean": (0.01 * jax.random.normal(k3, (d,))).astype(jnp.float32),
            prefix + "_var": (1.0 + jnp.abs(0.01 * jax.random.normal(k4, (d,)))).astype(jnp.float32),
        }

    params = {
        "wpv": n(ks[0], (dim_visual, dim_proj)), "bpv": n(ks[1], (dim_proj,)),
        "wpt": n(ks[2], (dim_text, dim_proj)), "bpt": n(ks[3], (dim_proj,)),
        "wav": n(ks[4], (dim_visual, dim_proj)), "bav": n(ks[5], (dim_proj,)),
        "wat": n(ks[6], (dim_text, dim_proj)), "bat": n(ks[7], (dim_proj,)),
        "wfc": n(ks[8], (2 * dim_proj, 2 * dim_proj)), "bfc": n(ks[9], (2 * dim_proj,)),
        "wcls": n(ks[10], (2 * dim_proj, num_class)), "bcls": n(ks[11], (num_class,)),
    }
    params.update(bn(ks[12], dim_proj, "bn_v"))
    params.update(bn(ks[13], dim_proj, "bn_t"))
    params.update(bn(ks[14], 2 * dim_proj, "bn_j"))
    return params


def reference_head(f_i, e_i, p, eps=1e-5):
    def self_attn(x):
        return jax.nn.softmax(x @ x.T, axis=-1) @ x

    def bn(x, pre):
        return ((x - p[pre + "_mean"]) / jnp.sqrt(p[pre + "_var"] + eps)
                * p[pre + "_gamma"] + p[pre + "_beta"])

    f_sa = self_attn(f_i)
    e_sa = self_attn(e_i)
    f_t = jax.nn.relu(bn(f_sa @ p["wpv"] + p["bpv"], "bn_v"))
    e_t = jax.nn.relu(bn(e_sa @ p["wpt"] + p["bpt"], "bn_t"))
    a_v = jax.nn.sigmoid(e_sa @ p["wat"] + p["bat"])
    a_e = jax.nn.sigmoid(f_sa @ p["wav"] + p["bav"])
    joint = jnp.concatenate([a_v * f_t, a_e * e_t], axis=1)
    h = jax.nn.relu(bn(joint @ p["wfc"] + p["bfc"], "bn_j"))
    return h @ p["wcls"] + p["bcls"]


# --------------------------------------------------------------------------
if __name__ == "__main__":
    B = 8                 # batch (self-attention runs across the batch axis)
    DIM_VISUAL = 256      # stands in for dim_visual_repr (1000 in the module)
    DIM_TEXT = 128        # stands in for dim_text_repr   (768  in the module)
    DIM_PROJ = 128        # stands in for dim_proj        (100  in the module)
    NUM_CLASS = 2

    key = jax.random.PRNGKey(0)
    k_f, k_e, k_p = jax.random.split(key, 3)

    # TODO(synk): densenet201 / Electra encoders are external pretrained models;
    # their pooled outputs are modeled here as deterministic random features.
    f_i = jax.random.normal(k_f, (B, DIM_VISUAL), dtype=jnp.float32)
    e_i = jax.random.normal(k_e, (B, DIM_TEXT), dtype=jnp.float32)

    raw = make_params(k_p, DIM_VISUAL, DIM_TEXT, DIM_PROJ, NUM_CLASS)
    prep = prepare_params(raw)

    out = jax.block_until_ready(fusion_head(f_i, e_i, prep))
    ref = jax.block_until_ready(reference_head(f_i, e_i, raw))

    assert out.shape == (B, NUM_CLASS)
    assert jnp.allclose(out, ref, rtol=1e-2, atol=1e-2), (out, ref)
    print("KERNEL_OK")
</pallas_src>

<mosaic_0001>
module attributes {stable_mosaic.version = 11 : i64} {
  func.func @_fusion_head_kernel(%arg0: memref<8x256xf32, #tpu.memory_space<vmem>>, %arg1: memref<8x128xf32, #tpu.memory_space<vmem>>, %arg2: memref<256x128xbf16, #tpu.memory_space<vmem>>, %arg3: memref<1x128xf32, #tpu.memory_space<vmem>>, %arg4: memref<128x128xbf16, #tpu.memory_space<vmem>>, %arg5: memref<1x128xf32, #tpu.memory_space<vmem>>, %arg6: memref<256x128xbf16, #tpu.memory_space<vmem>>, %arg7: memref<1x128xf32, #tpu.memory_space<vmem>>, %arg8: memref<128x128xbf16, #tpu.memory_space<vmem>>, %arg9: memref<1x128xf32, #tpu.memory_space<vmem>>, %arg10: memref<128x256xbf16, #tpu.memory_space<vmem>>, %arg11: memref<128x256xbf16, #tpu.memory_space<vmem>>, %arg12: memref<1x256xf32, #tpu.memory_space<vmem>>, %arg13: memref<256x128xbf16, #tpu.memory_space<vmem>>, %arg14: memref<1x128xf32, #tpu.memory_space<vmem>>, %arg15: memref<8x128xf32, #tpu.memory_space<vmem>>) attributes {dimension_semantics = [], scalar_prefetch = 0 : i64, scratch_operands = 0 : i64, tpu.core_type = #tpu.core_type<tc>} {
    %c0 = arith.constant 0 : index
    %c0_0 = arith.constant 0 : index
    %0 = vector.load %arg0[%c0, %c0_0] : memref<8x256xf32, #tpu.memory_space<vmem>>, vector<8x256xf32>
    %c0_1 = arith.constant 0 : index
    %c0_2 = arith.constant 0 : index
    %1 = vector.load %arg1[%c0_1, %c0_2] : memref<8x128xf32, #tpu.memory_space<vmem>>, vector<8x128xf32>
    %cst = arith.constant dense<0.000000e+00> : vector<8x8xf32>
    %2 = tpu.matmul %0, %0, %cst {dimension_numbers = #tpu.dot_dimension_numbers<[1], [1], [0], [0], [0, 0, 1, 0], [], []>} : vector<8x256xf32>, vector<8x256xf32>, vector<8x8xf32> -> vector<8x8xf32>
    %cst_3 = arith.constant dense<0xFF800000> : vector<8xf32>
    %3 = vector.multi_reduction <maximumf>, %2, %cst_3 [1] : vector<8x8xf32> to vector<8xf32>
    %4 = vector.shape_cast %3 : vector<8xf32> to vector<8x1xf32>
    %5 = vector.broadcast %4 : vector<8x1xf32> to vector<8x8xf32>
    %6 = arith.subf %2, %5 : vector<8x8xf32>
    %7 = math.exp %6 : vector<8x8xf32>
    %cst_4 = arith.constant dense<0.000000e+00> : vector<8xf32>
    %8 = vector.multi_reduction <add>, %7, %cst_4 [1] : vector<8x8xf32> to vector<8xf32>
    %9 = vector.shape_cast %8 : vector<8xf32> to vector<8x1xf32>
    %10 = tpu.reciprocal %9 {approx = true} : vector<8x1xf32> -> vector<8x1xf32>
    %11 = vector.broadcast %10 : vector<8x1xf32> to vector<8x8xf32>
    %12 = arith.mulf %7, %11 : vector<8x8xf32>
    %cst_5 = arith.constant dense<0.000000e+00> : vector<8x256xf32>
    %13 = tpu.matmul %12, %0, %cst_5 {dimension_numbers = #tpu.dot_dimension_numbers<[1], [0], [0], [1], [0, 0, 1, 1], [], []>} : vector<8x8xf32>, vector<8x256xf32>, vector<8x256xf32> -> vector<8x256xf32>
    %cst_6 = arith.constant dense<0.000000e+00> : vector<8x8xf32>
    %14 = tpu.matmul %1, %1, %cst_6 {dimension_numbers = #tpu.dot_dimension_numbers<[1], [1], [0], [0], [0, 0, 1, 0], [], []>} : vector<8x128xf32>, vector<8x128xf32>, vector<8x8xf32> -> vector<8x8xf32>
    %cst_7 = arith.constant dense<0xFF800000> : vector<8xf32>
    %15 = vector.multi_reduction <maximumf>, %14, %cst_7 [1] : vector<8x8xf32> to vector<8xf32>
    %16 = vector.shape_cast %15 : vector<8xf32> to vector<8x1xf32>
    %17 = vector.broadcast %16 : vector<8x1xf32> to vector<8x8xf32>
    %18 = arith.subf %14, %17 : vector<8x8xf32>
    %19 = math.exp %18 : vector<8x8xf32>
    %cst_8 = arith.constant dense<0.000000e+00> : vector<8xf32>
    %20 = vector.multi_reduction <add>, %19, %cst_8 [1] : vector<8x8xf32> to vector<8xf32>
    %21 = vector.shape_cast %20 : vector<8xf32> to vector<8x1xf32>
    %22 = tpu.reciprocal %21 {approx = true} : vector<8x1xf32> -> vector<8x1xf32>
    %23 = vector.broadcast %22 : vector<8x1xf32> to vector<8x8xf32>
    %24 = arith.mulf %19, %23 : vector<8x8xf32>
    %cst_9 = arith.constant dense<0.000000e+00> : vector<8x128xf32>
    %25 = tpu.matmul %24, %1, %cst_9 {dimension_numbers = #tpu.dot_dimension_numbers<[1], [0], [0], [1], [0, 0, 1, 1], [], []>} : vector<8x8xf32>, vector<8x128xf32>, vector<8x128xf32> -> vector<8x128xf32>
    %26 = arith.truncf %13 : vector<8x256xf32> to vector<8x256xbf16>
    %27 = arith.truncf %25 : vector<8x128xf32> to vector<8x128xbf16>
    %c0_10 = arith.constant 0 : index
    %c0_11 = arith.constant 0 : index
    %28 = vector.load %arg2[%c0_10, %c0_11] : memref<256x128xbf16, #tpu.memory_space<vmem>>, vector<256x128xbf16>
    %cst_12 = arith.constant dense<0.000000e+00> : vector<8x128xf32>
    %29 = tpu.matmul %26, %28, %cst_12 {dimension_numbers = #tpu.dot_dimension_numbers<[1], [0], [0], [1], [0, 0, 1, 1], [], []>} : vector<8x256xbf16>, vector<256x128xbf16>, vector<8x128xf32> -> vector<8x128xf32>
    %c0_13 = arith.constant 0 : index
    %c0_14 = arith.constant 0 : index
    %30 = vector.load %arg3[%c0_13, %c0_14] : memref<1x128xf32, #tpu.memory_space<vmem>>, vector<1x128xf32>
    %31 = vector.broadcast %30 : vector<1x128xf32> to vector<8x128xf32>
    %32 = arith.addf %29, %31 : vector<8x128xf32>
    %cst_15 = arith.constant 0.000000e+00 : f32
    %33 = vector.broadcast %cst_15 : f32 to vector<8x128xf32>
    %34 = arith.maximumf %32, %33 : vector<8x128xf32>
    %c0_16 = arith.constant 0 : index
    %c0_17 = arith.constant 0 : index
    %35 = vector.load %arg4[%c0_16, %c0_17] : memref<128x128xbf16, #tpu.memory_space<vmem>>, vector<128x128xbf16>
    %cst_18 = arith.constant dense<0.000000e+00> : vector<8x128xf32>
    %36 = tpu.matmul %27, %35, %cst_18 {dimension_numbers = #tpu.dot_dimension_numbers<[1], [0], [0], [1], [0, 0, 1, 1], [], []>} : vector<8x128xbf16>, vector<128x128xbf16>, vector<8x128xf32> -> vector<8x128xf32>
    %c0_19 = arith.constant 0 : index
    %c0_20 = arith.constant 0 : index
    %37 = vector.load %arg5[%c0_19, %c0_20] : memref<1x128xf32, #tpu.memory_space<vmem>>, vector<1x128xf32>
    %38 = vector.broadcast %37 : vector<1x128xf32> to vector<8x128xf32>
    %39 = arith.addf %36, %38 : vector<8x128xf32>
    %cst_21 = arith.constant 0.000000e+00 : f32
    %40 = vector.broadcast %cst_21 : f32 to vector<8x128xf32>
    %41 = arith.maximumf %39, %40 : vector<8x128xf32>
    %c0_22 = arith.constant 0 : index
    %c0_23 = arith.constant 0 : index
    %42 = vector.load %arg8[%c0_22, %c0_23] : memref<128x128xbf16, #tpu.memory_space<vmem>>, vector<128x128xbf16>
    %cst_24 = arith.constant dense<0.000000e+00> : vector<8x128xf32>
    %43 = tpu.matmul %27, %42, %cst_24 {dimension_numbers = #tpu.dot_dimension_numbers<[1], [0], [0], [1], [0, 0, 1, 1], [], []>} : vector<8x128xbf16>, vector<128x128xbf16>, vector<8x128xf32> -> vector<8x128xf32>
    %c0_25 = arith.constant 0 : index
    %c0_26 = arith.constant 0 : index
    %44 = vector.load %arg9[%c0_25, %c0_26] : memref<1x128xf32, #tpu.memory_space<vmem>>, vector<1x128xf32>
    %45 = vector.broadcast %44 : vector<1x128xf32> to vector<8x128xf32>
    %46 = arith.addf %43, %45 : vector<8x128xf32>
    %47 = arith.negf %46 : vector<8x128xf32>
    %48 = math.exp %47 : vector<8x128xf32>
    %cst_27 = arith.constant 1.000000e+00 : f32
    %49 = vector.broadcast %cst_27 : f32 to vector<8x128xf32>
    %50 = arith.addf %49, %48 : vector<8x128xf32>
    %51 = arith.divf %49, %50 : vector<8x128xf32>
    %c0_28 = arith.constant 0 : index
    %c0_29 = arith.constant 0 : index
    %52 = vector.load %arg6[%c0_28, %c0_29] : memref<256x128xbf16, #tpu.memory_space<vmem>>, vector<256x128xbf16>
    %cst_30 = arith.constant dense<0.000000e+00> : vector<8x128xf32>
    %53 = tpu.matmul %26, %52, %cst_30 {dimension_numbers = #tpu.dot_dimension_numbers<[1], [0], [0], [1], [0, 0, 1, 1], [], []>} : vector<8x256xbf16>, vector<256x128xbf16>, vector<8x128xf32> -> vector<8x128xf32>
    %c0_31 = arith.constant 0 : index
    %c0_32 = arith.constant 0 : index
    %54 = vector.load %arg7[%c0_31, %c0_32] : memref<1x128xf32, #tpu.memory_space<vmem>>, vector<1x128xf32>
    %55 = vector.broadcast %54 : vector<1x128xf32> to vector<8x128xf32>
    %56 = arith.addf %53, %55 : vector<8x128xf32>
    %57 = arith.negf %56 : vector<8x128xf32>
    %58 = math.exp %57 : vector<8x128xf32>
    %cst_33 = arith.constant 1.000000e+00 : f32
    %59 = vector.broadcast %cst_33 : f32 to vector<8x128xf32>
    %60 = arith.addf %59, %58 : vector<8x128xf32>
    %61 = arith.divf %59, %60 : vector<8x128xf32>
    %62 = arith.mulf %51, %34 : vector<8x128xf32>
    %63 = arith.truncf %62 : vector<8x128xf32> to vector<8x128xbf16>
    %64 = arith.mulf %61, %41 : vector<8x128xf32>
    %65 = arith.truncf %64 : vector<8x128xf32> to vector<8x128xbf16>
    %c0_34 = arith.constant 0 : index
    %c0_35 = arith.constant 0 : index
    %66 = vector.load %arg10[%c0_34, %c0_35] : memref<128x256xbf16, #tpu.memory_space<vmem>>, vector<128x256xbf16>
    %cst_36 = arith.constant dense<0.000000e+00> : vector<8x256xf32>
    %67 = tpu.matmul %63, %66, %cst_36 {dimension_numbers = #tpu.dot_dimension_numbers<[1], [0], [0], [1], [0, 0, 1, 1], [], []>} : vector<8x128xbf16>, vector<128x256xbf16>, vector<8x256xf32> -> vector<8x256xf32>
    %c0_37 = arith.constant 0 : index
    %c0_38 = arith.constant 0 : index
    %68 = vector.load %arg11[%c0_37, %c0_38] : memref<128x256xbf16, #tpu.memory_space<vmem>>, vector<128x256xbf16>
    %cst_39 = arith.constant dense<0.000000e+00> : vector<8x256xf32>
    %69 = tpu.matmul %65, %68, %cst_39 {dimension_numbers = #tpu.dot_dimension_numbers<[1], [0], [0], [1], [0, 0, 1, 1], [], []>} : vector<8x128xbf16>, vector<128x256xbf16>, vector<8x256xf32> -> vector<8x256xf32>
    %70 = arith.addf %67, %69 : vector<8x256xf32>
    %c0_40 = arith.constant 0 : index
    %c0_41 = arith.constant 0 : index
    %71 = vector.load %arg12[%c0_40, %c0_41] : memref<1x256xf32, #tpu.memory_space<vmem>>, vector<1x256xf32>
    %72 = vector.broadcast %71 : vector<1x256xf32> to vector<8x256xf32>
    %73 = arith.addf %70, %72 : vector<8x256xf32>
    %cst_42 = arith.constant 0.000000e+00 : f32
    %74 = vector.broadcast %cst_42 : f32 to vector<8x256xf32>
    %75 = arith.maximumf %73, %74 : vector<8x256xf32>
    %76 = arith.truncf %75 : vector<8x256xf32> to vector<8x256xbf16>
    %c0_43 = arith.constant 0 : index
    %c0_44 = arith.constant 0 : index
    %77 = vector.load %arg13[%c0_43, %c0_44] : memref<256x128xbf16, #tpu.memory_space<vmem>>, vector<256x128xbf16>
    %cst_45 = arith.constant dense<0.000000e+00> : vector<8x128xf32>
    %78 = tpu.matmul %76, %77, %cst_45 {dimension_numbers = #tpu.dot_dimension_numbers<[1], [0], [0], [1], [0, 0, 1, 1], [], []>} : vector<8x256xbf16>, vector<256x128xbf16>, vector<8x128xf32> -> vector<8x128xf32>
    %c0_46 = arith.constant 0 : index
    %c0_47 = arith.constant 0 : index
    %79 = vector.load %arg14[%c0_46, %c0_47] : memref<1x128xf32, #tpu.memory_space<vmem>>, vector<1x128xf32>
    %80 = vector.broadcast %79 : vector<1x128xf32> to vector<8x128xf32>
    %81 = arith.addf %78, %80 : vector<8x128xf32>
    %c0_48 = arith.constant 0 : index
    %c0_49 = arith.constant 0 : index
    %82 = vector.load %arg15[%c0_48, %c0_49] : memref<8x128xf32, #tpu.memory_space<vmem>>, vector<8x128xf32>
    tpu.vector_store %arg15[%c0_48, %c0_49], %81 {strides = array<i32>} : memref<8x128xf32, #tpu.memory_space<vmem>>, vector<8x128xf32>,
    return
  }
}

</mosaic_0001>

<llo_original>
// kernel: tpu_custom_call.1
$region0: #{tpu_custom_call.1}
  #allocation0 [shape = 'u32[]', space=smem, size = 0x4, offset = 0x4, fixed_abs, tag = 'smem constant byte address 0x4 - core index']
  #allocation1 [shape = 'u32[144,128]{1,0:T(1,128)}', space=vmem, size = 0x12000, scoped, tag = 'internal scratch']
  %s0 = inlined_call_operand.hbm [shape: f32[8,256], index: 0, kind: input, shape index: {}]
  %s1 = inlined_call_operand.hbm [shape: f32[8,128], index: 1, kind: input, shape index: {}]
  %s2 = inlined_call_operand.hbm [shape: bf16[256,128], index: 2, kind: input, shape index: {}]
  %s3 = inlined_call_operand.vmem [shape: f32[1,128], index: 3, kind: input, shape index: {}]
  %s4 = inlined_call_operand.hbm [shape: bf16[128,128], index: 4, kind: input, shape index: {}]
  %s5 = inlined_call_operand.vmem [shape: f32[1,128], index: 5, kind: input, shape index: {}]
  %s6 = inlined_call_operand.hbm [shape: bf16[256,128], index: 6, kind: input, shape index: {}]
  %s7 = inlined_call_operand.vmem [shape: f32[1,128], index: 7, kind: input, shape index: {}]
  %s8 = inlined_call_operand.hbm [shape: bf16[128,128], index: 8, kind: input, shape index: {}]
  %s9 = inlined_call_operand.vmem [shape: f32[1,128], index: 9, kind: input, shape index: {}]
  %s10 = inlined_call_operand.hbm [shape: bf16[128,256], index: 10, kind: input, shape index: {}]
  %s11 = inlined_call_operand.hbm [shape: bf16[128,256], index: 11, kind: input, shape index: {}]
  %s12 = inlined_call_operand.vmem [shape: f32[1,256], index: 12, kind: input, shape index: {}]
  %s13 = inlined_call_operand.hbm [shape: bf16[256,128], index: 13, kind: input, shape index: {}]
  %s14 = inlined_call_operand.vmem [shape: f32[1,128], index: 14, kind: input, shape index: {}]
  %s15 = inlined_call_operand.hbm [shape: f32[8,128], index: 15, kind: output, shape index: {}]
  %s16 = sld [smem:[#allocation0]]
  $region106: #{tpu_custom_call.1} parent=0
    _
  %s18 = ssub.s32 1, %s16
  %s19 = scalar_select 0, %s18, %s16
  $region1: #{tpu_custom_call.1} parent=0
    #allocation2 [shape = 'u8[8192]{0}', space=vmem, size = 0x2000, scoped, tag = 'input window, operand 0, single buffered']
    #allocation3 [shape = 's32[1]{0}', space=sflag, size = 0x4, scoped, tag = 'scoped memory for tpu_custom_call.1']
    #allocation4 [shape = 's32[1]{0}', space=sflag, size = 0x4, scoped, tag = 'scoped memory for tpu_custom_call.1']
    #allocation5 [shape = 'u8[4096]{0}', space=vmem, size = 0x1000, scoped, tag = 'input window, operand 1, single buffered']
    #allocation6 [shape = 's32[1]{0}', space=sflag, size = 0x4, scoped, tag = 'scoped memory for tpu_custom_call.1']
    #allocation7 [shape = 'u8[65536]{0}', space=vmem, size = 0x10000, scoped, tag = 'input window, operand 2, single buffered']
    #allocation8 [shape = 'u8[32768]{0}', space=vmem, size = 0x8000, scoped, tag = 'input window, operand 4, single buffered']
    #allocation9 [shape = 's32[1]{0}', space=sflag, size = 0x4, scoped, tag = 'scoped memory for tpu_custom_call.1']
    #allocation10 [shape = 'u8[65536]{0}', space=vmem, size = 0x10000, scoped, tag = 'input window, operand 6, single buffered']
    #allocation11 [shape = 'u8[32768]{0}', space=vmem, size = 0x8000, scoped, tag = 'input window, operand 8, single buffered']
    #allocation12 [shape = 's32[1]{0}', space=sflag, size = 0x4, scoped, tag = 'scoped memory for tpu_custom_call.1']
    #allocation13 [shape = 'u8[65536]{0}', space=vmem, size = 0x10000, scoped, tag = 'input window, operand 10, single buffered']
    #allocation14 [shape = 'u8[65536]{0}', space=vmem, size = 0x10000, scoped, tag = 'input window, operand 11, single buffered']
    #allocation15 [shape = 's32[1]{0}', space=sflag, size = 0x4, scoped, tag = 'scoped memory for tpu_custom_call.1']
    #allocation16 [shape = 'u8[65536]{0}', space=vmem, size = 0x10000, scoped, tag = 'input window, operand 13, single buffered']
    #allocation17 [shape = 'u8[4096]{0}', space=vmem, size = 0x1000, scoped, tag = 'output window, operand 0, single buffered']
    %20 = vsyncpa [#allocation3], 0
    %21 = vsyncpa [#allocation6], 0
    %22 = vsyncpa [#allocation9], 0
    %23 = vsyncpa [#allocation12], 0
    %24 = vsyncpa [#allocation15], 0
    %25 = vsyncpa [#allocation4], 0
    // Predicated region
    $region2: #{tpu_custom_call.1} parent=1 // pred_check
      _
    $region3: #{tpu_custom_call.1} parent=1 // pred_check_branch
      %27 = sbr.rel (0) target = $region5
    $region4: #{tpu_custom_call.1} parent=1 // pred_region
      %s29 = ssub.s32 256, 256
      %30 = vsyncadd [#allocation3], %s29
      %s32 = sshll.u32 [#allocation2], 4
      %s33 = int_to_ptr.vmem [resolvable:$true] %s32
      %35 = dma.hbm_to_vmem [thread:$0]  %s0, 256, %s33, [#allocation3]
    $region5: #{tpu_custom_call.1} parent=1 // pred_fallthru
      _
    // Predicated region
    $region6: #{tpu_custom_call.1} parent=1 // pred_check
      _
    $region7: #{tpu_custom_call.1} parent=1 // pred_check_branch
      %37 = sbr.rel (0) target = $region9
    $region8: #{tpu_custom_call.1} parent=1 // pred_region
      %s39 = ssub.s32 128, 128
      %40 = vsyncadd [#allocation6], %s39
      %s42 = sshll.u32 [#allocation5], 4
      %s43 = int_to_ptr.vmem [resolvable:$true] %s42
      %45 = dma.hbm_to_vmem [thread:$0]  %s1, 128, %s43, [#allocation6]
    $region9: #{tpu_custom_call.1} parent=1 // pred_fallthru
      _
    // Predicated region
    $region10: #{tpu_custom_call.1} parent=1 // pred_check
      _
    $region11: #{tpu_custom_call.1} parent=1 // pred_check_branch
      %47 = sbr.rel (0) target = $region13
    $region12: #{tpu_custom_call.1} parent=1 // pred_region
      %s49 = ssub.s32 2048, 2048
      %50 = vsyncadd [#allocation6], %s49
      %s51 = sshll.u32 [#allocation7], 4
      %s52 = int_to_ptr.vmem [resolvable:$true] %s51
      %57 = dma.hbm_to_vmem [thread:$0]  %s2, 2048, %s52, [#allocation6], 64, 64, 4
    $region13: #{tpu_custom_call.1} parent=1 // pred_fallthru
      _
    // Predicated region
    $region14: #{tpu_custom_call.1} parent=1 // pred_check
      _
    $region15: #{tpu_custom_call.1} parent=1 // pred_check_branch
      %59 = sbr.rel (0) target = $region17
    $region16: #{tpu_custom_call.1} parent=1 // pred_region
      _
    $region17: #{tpu_custom_call.1} parent=1 // pred_fallthru
      _
    // Predicated region
    $region18: #{tpu_custom_call.1} parent=1 // pred_check
      _
    $region19: #{tpu_custom_call.1} parent=1 // pred_check_branch
      %61 = sbr.rel (0) target = $region21
    $region20: #{tpu_custom_call.1} parent=1 // pred_region
      %s63 = ssub.s32 1024, 1024
      %64 = vsyncadd [#allocation9], %s63
      %s65 = sshll.u32 [#allocation8], 4
      %s66 = int_to_ptr.vmem [resolvable:$true] %s65
      %71 = dma.hbm_to_vmem [thread:$0]  %s4, 1024, %s66, [#allocation9], 64, 64, 4
    $region21: #{tpu_custom_call.1} parent=1 // pred_fallthru
      _
    // Predicated region
    $region22: #{tpu_custom_call.1} parent=1 // pred_check
      _
    $region23: #{tpu_custom_call.1} parent=1 // pred_check_branch
      %73 = sbr.rel (0) target = $region25
    $region24: #{tpu_custom_call.1} parent=1 // pred_region
      _
    $region25: #{tpu_custom_call.1} parent=1 // pred_fallthru
      _
    // Predicated region
    $region26: #{tpu_custom_call.1} parent=1 // pred_check
      _
    $region27: #{tpu_custom_call.1} parent=1 // pred_check_branch
      %75 = sbr.rel (0) target = $region29
    $region28: #{tpu_custom_call.1} parent=1 // pred_region
      %s77 = ssub.s32 2048, 2048
      %78 = vsyncadd [#allocation9], %s77
      %s79 = sshll.u32 [#allocation10], 4
      %s80 = int_to_ptr.vmem [resolvable:$true] %s79
      %85 = dma.hbm_to_vmem [thread:$0]  %s6, 2048, %s80, [#allocation9], 64, 64, 4
    $region29: #{tpu_custom_call.1} parent=1 // pred_fallthru
      _
    // Predicated region
    $region30: #{tpu_custom_call.1} parent=1 // pred_check
      _
    $region31: #{tpu_custom_call.1} parent=1 // pred_check_branch
      %87 = sbr.rel (0) target = $region33
    $region32: #{tpu_custom_call.1} parent=1 // pred_region
      _
    $region33: #{tpu_custom_call.1} parent=1 // pred_fallthru
      _
    // Predicated region
    $region34: #{tpu_custom_call.1} parent=1 // pred_check
      _
    $region35: #{tpu_custom_call.1} parent=1 // pred_check_branch
      %89 = sbr.rel (0) target = $region37
    $region36: #{tpu_custom_call.1} parent=1 // pred_region
      %s91 = ssub.s32 1024, 1024
      %92 = vsyncadd [#allocation12], %s91
      %s93 = sshll.u32 [#allocation11], 4
      %s94 = int_to_ptr.vmem [resolvable:$true] %s93
      %99 = dma.hbm_to_vmem [thread:$0]  %s8, 1024, %s94, [#allocation12], 64, 64, 4
    $region37: #{tpu_custom_call.1} parent=1 // pred_fallthru
      _
    // Predicated region
    $region38: #{tpu_custom_call.1} parent=1 // pred_check
      _
    $region39: #{tpu_custom_call.1} parent=1 // pred_check_branch
      %101 = sbr.rel (0) target = $region41
    $region40: #{tpu_custom_call.1} parent=1 // pred_region
      _
    $region41: #{tpu_custom_call.1} parent=1 // pred_fallthru
      _
    // Predicated region
    $region42: #{tpu_custom_call.1} parent=1 // pred_check
      _
    $region43: #{tpu_custom_call.1} parent=1 // pred_check_branch
      %103 = sbr.rel (0) target = $region45
    $region44: #{tpu_custom_call.1} parent=1 // pred_region
      %s105 = ssub.s32 2048, 2048
      %106 = vsyncadd [#allocation12], %s105
      %s107 = sshll.u32 [#allocation13], 4
      %s108 = int_to_ptr.vmem [resolvable:$true] %s107
      %113 = dma.hbm_to_vmem [thread:$0]  %s10, 2048, %s108, [#allocation12], 128, 128, 8
    $region45: #{tpu_custom_call.1} parent=1 // pred_fallthru
      _
    // Predicated region
    $region46: #{tpu_custom_call.1} parent=1 // pred_check
      _
    $region47: #{tpu_custom_call.1} parent=1 // pred_check_branch
      %115 = sbr.rel (0) target = $region49
    $region48: #{tpu_custom_call.1} parent=1 // pred_region
      %s117 = ssub.s32 2048, 2048
      %118 = vsyncadd [#allocation15], %s117
      %s119 = sshll.u32 [#allocation14], 4
      %s120 = int_to_ptr.vmem [resolvable:$true] %s119
      %125 = dma.hbm_to_vmem [thread:$0]  %s11, 2048, %s120, [#allocation15], 128, 128, 8
    $region49: #{tpu_custom_call.1} parent=1 // pred_fallthru
      _
    // Predicated region
    $region50: #{tpu_custom_call.1} parent=1 // pred_check
      _
    $region51: #{tpu_custom_call.1} parent=1 // pred_check_branch
      %127 = sbr.rel (0) target = $region53
    $region52: #{tpu_custom_call.1} parent=1 // pred_region
      _
    $region53: #{tpu_custom_call.1} parent=1 // pred_fallthru
      _
    // Predicated region
    $region54: #{tpu_custom_call.1} parent=1 // pred_check
      _
    $region55: #{tpu_custom_call.1} parent=1 // pred_check_branch
      %129 = sbr.rel (0) target = $region57
    $region56: #{tpu_custom_call.1} parent=1 // pred_region
      %s131 = ssub.s32 2048, 2048
      %132 = vsyncadd [#allocation15], %s131
      %s133 = sshll.u32 [#allocation16], 4
      %s134 = int_to_ptr.vmem [resolvable:$true] %s133
      %139 = dma.hbm_to_vmem [thread:$0]  %s13, 2048, %s134, [#allocation15], 64, 64, 4
    $region57: #{tpu_custom_call.1} parent=1 // pred_fallthru
      _
    // Predicated region
    $region58: #{tpu_custom_call.1} parent=1 // pred_check
      _
    $region59: #{tpu_custom_call.1} parent=1 // pred_check_branch
      %141 = sbr.rel (0) target = $region61
    $region60: #{tpu_custom_call.1} parent=1 // pred_region
      _
    $region61: #{tpu_custom_call.1} parent=1 // pred_fallthru
      _
    // Predicated region
    $region62: #{tpu_custom_call.1} parent=1 // pred_check
      _
    $region63: #{tpu_custom_call.1} parent=1 // pred_check_branch
      %143 = sbr.rel (0) target = $region65
    $region64: #{tpu_custom_call.1} parent=1 // pred_region
      %144 = dma.done [#allocation3], 256
    $region65: #{tpu_custom_call.1} parent=1 // pred_fallthru
      _
    // Predicated region
    $region66: #{tpu_custom_call.1} parent=1 // pred_check
      _
    $region67: #{tpu_custom_call.1} parent=1 // pred_check_branch
      %146 = sbr.rel (0) target = $region69
    $region68: #{tpu_custom_call.1} parent=1 // pred_region
      %147 = dma.done [#allocation6], 128
    $region69: #{tpu_custom_call.1} parent=1 // pred_fallthru
      _
    // Predicated region
    $region70: #{tpu_custom_call.1} parent=1 // pred_check
      _
    $region71: #{tpu_custom_call.1} parent=1 // pred_check_branch
      %149 = sbr.rel (0) target = $region73
    $region72: #{tpu_custom_call.1} parent=1 // pred_region
      %150 = dma.done [#allocation6], 2048
    $region73: #{tpu_custom_call.1} parent=1 // pred_fallthru
      _
    // Predicated region
    $region74: #{tpu_custom_call.1} parent=1 // pred_check
      _
    $region75: #{tpu_custom_call.1} parent=1 // pred_check_branch
      %152 = sbr.rel (0) target = $region77
    $region76: #{tpu_custom_call.1} parent=1 // pred_region
      %153 = dma.done [#allocation9], 1024
    $region77: #{tpu_custom_call.1} parent=1 // pred_fallthru
      _
    // Predicated region
    $region78: #{tpu_custom_call.1} parent=1 // pred_check
      _
    $region79: #{tpu_custom_call.1} parent=1 // pred_check_branch
      %155 = sbr.rel (0) target = $region81
    $region80: #{tpu_custom_call.1} parent=1 // pred_region
      %156 = dma.done [#allocation9], 2048
    $region81: #{tpu_custom_call.1} parent=1 // pred_fallthru
      _
    // Predicated region
    $region82: #{tpu_custom_call.1} parent=1 // pred_check
      _
    $region83: #{tpu_custom_call.1} parent=1 // pred_check_branch
      %158 = sbr.rel (0) target = $region85
    $region84: #{tpu_custom_call.1} parent=1 // pred_region
      %159 = dma.done [#allocation12], 1024
    $region85: #{tpu_custom_call.1} parent=1 // pred_fallthru
      _
    // Predicated region
    $region86: #{tpu_custom_call.1} parent=1 // pred_check
      _
    $region87: #{tpu_custom_call.1} parent=1 // pred_check_branch
      %161 = sbr.rel (0) target = $region89
    $region88: #{tpu_custom_call.1} parent=1 // pred_region
      %162 = dma.done [#allocation12], 2048
    $region89: #{tpu_custom_call.1} parent=1 // pred_fallthru
      _
    // Predicated region
    $region90: #{tpu_custom_call.1} parent=1 // pred_check
      _
    $region91: #{tpu_custom_call.1} parent=1 // pred_check_branch
      %164 = sbr.rel (0) target = $region93
    $region92: #{tpu_custom_call.1} parent=1 // pred_region
      %165 = dma.done [#allocation15], 2048
    $region93: #{tpu_custom_call.1} parent=1 // pred_fallthru
      _
    // Predicated region
    $region94: #{tpu_custom_call.1} parent=1 // pred_check
      _
    $region95: #{tpu_custom_call.1} parent=1 // pred_check_branch
      %167 = sbr.rel (0) target = $region97
    $region96: #{tpu_custom_call.1} parent=1 // pred_region
      %168 = dma.done [#allocation15], 2048
    $region97: #{tpu_custom_call.1} parent=1 // pred_fallthru
      _
    %v170 = vld [vmem:[#allocation2] sm:$0xff]
    %v171 = vld [vmem:[#allocation2 + $0x8] sm:$0xff]
    %v172 = vld [vmem:[#allocation5] sm:$0xff]
    %173 = vmatprep.subr.mxu0 %v171
    %174 = vmatpush1.xpose.msra.mxu0 %v170
    %175 = vmatprep.subr.mxu0 0.0
    %176 = vmatpush1.xpose.msra.mxu0 0.0
    %177 = vmatprep.subr.mxu0 0.0
    %178 = vmatpush1.xpose.msra.mxu0 0.0
    %179 = vmatprep.subr.mxu0 0.0
    %180 = vmatpush1.xpose.msra.mxu0 0.0
    %181 = vmatprep.subr.mxu0 0.0
    %182 = vmatpush1.xpose.msra.mxu0 0.0
    %183 = vmatprep.subr.mxu0 0.0
    %184 = vmatpush1.xpose.msra.mxu0 0.0
    %185 = vmatprep.subr.mxu0 0.0
    %186 = vmatpush1.xpose.msra.mxu0 0.0
    %187 = vmatprep.subr.mxu0 0.0
    %188 = vmatpush1.xpose.msra.mxu0 0.0
    %189 = vmatprep.subr.mxu0 0.0
    %190 = vmatpush1.xpose.msra.mxu0 0.0
    %191 = vmatprep.subr.mxu0 0.0
    %192 = vmatpush1.xpose.msra.mxu0 0.0
    %193 = vmatprep.subr.mxu0 0.0
    %194 = vmatpush1.xpose.msra.mxu0 0.0
    %195 = vmatprep.subr.mxu0 0.0
    %196 = vmatpush1.xpose.msra.mxu0 0.0
    %197 = vmatprep.subr.mxu0 0.0
    %198 = vmatpush1.xpose.msra.mxu0 0.0
    %199 = vmatprep.subr.mxu0 0.0
    %200 = vmatpush1.xpose.msra.mxu0 0.0
    %201 = vmatprep.subr.mxu0 0.0
    %202 = vmatpush1.xpose.msra.mxu0 0.0
    %203 = vmatprep.subr.mxu0 0.0
    %204 = vmatpush1.xpose.msra.mxu0 0.0
    %205 = vmatprep.subr.mxu0 0.0
    %206 = vmatpush1.xpose.msra.mxu0 0.0
    %207 = vmatprep.subr.mxu0 0.0
    %208 = vmatpush1.xpose.msra.mxu0 0.0
    %209 = vmatprep.subr.mxu0 0.0
    %210 = vmatpush1.xpose.msra.mxu0 0.0
    %211 = vmatprep.subr.mxu0 0.0
    %212 = vmatpush1.xpose.msra.mxu0 0.0
    %213 = vmatprep.subr.mxu0 0.0
    %214 = vmatpush1.xpose.msra.mxu0 0.0
    %215 = vmatprep.subr.mxu0 0.0
    %216 = vmatpush1.xpose.msra.mxu0 0.0
    %217 = vmatprep.subr.mxu0 0.0
    %218 = vmatpush1.xpose.msra.mxu0 0.0
    %219 = vmatprep.subr.mxu0 0.0
    %220 = vmatpush1.xpose.msra.mxu0 0.0
    %221 = vmatprep.subr.mxu0 0.0
    %222 = vmatpush1.xpose.msra.mxu0 0.0
    %223 = vmatprep.subr.mxu0 0.0
    %224 = vmatpush1.xpose.msra.mxu0 0.0
    %225 = vmatprep.subr.mxu0 0.0
    %226 = vmatpush1.xpose.msra.mxu0 0.0
    %227 = vmatprep.subr.mxu0 0.0
    %228 = vmatpush1.xpose.msra.mxu0 0.0
    %229 = vmatprep.subr.mxu0 0.0
    %230 = vmatpush1.xpose.msra.mxu0 0.0
    %231 = vmatprep.subr.mxu0 0.0
    %232 = vmatpush1.xpose.msra.mxu0 0.0
    %233 = vmatprep.subr.mxu0 0.0
    %234 = vmatpush1.xpose.msra.mxu0 0.0
    %235 = vmatprep.subr.mxu0 0.0
    %236 = vmatpush1.xpose.msra.mxu0 0.0
    %237 = vmatprep.mubr.f32.mxu0 %v171
    %238 = vmatmul.mubr.f32.gmra.mrb[0].mxu0 %v170
    %v239 = vpop.f32.mrb[0].mxu0
    %v240 = vadd.f32 0.0, %v239
    %v241 = vpop.f32.mrb[0].mxu0
    %242 = vdwg.mxu0
    %vm243 = vcmask 64512
    %v244 = vsel %vm243, %v240, -inf
    %245 = vmax.xlane.f32.xlu0 %v244
    %v246 = vpop.xlane.xlu0 %245
    %v247 = vsub.f32 %v240, %v246
    %v248 = vmul.f32 %v247, 1.442695
    %v249 = vpow.pop %v248
    %v250 = vsel %vm243, %v249, 0.0
    %251 = vadd.xlane.f32.xlu0 %v250
    %v252 = vpop.xlane.xlu0 %251
    %v253 = vrcp.pop %v252
    %v254 = vmul.f32 %v249, %v253
    %v256 = vsel %vm243, %v254, 0
    %258 = vmatprep.subr.mxu0 %v171
    %259 = vmatpush1.msra.mxu0 %v170
    %260 = vmatprep.subr.mxu0 0.0
    %261 = vmatpush1.msra.mxu0 0.0
    %262 = vmatprep.subr.mxu0 0.0
    %263 = vmatpush1.msra.mxu0 0.0
    %264 = vmatprep.subr.mxu0 0.0
    %265 = vmatpush1.msra.mxu0 0.0
    %266 = vmatprep.subr.mxu0 0.0
    %267 = vmatpush1.msra.mxu0 0.0
    %268 = vmatprep.subr.mxu0 0.0
    %269 = vmatpush1.msra.mxu0 0.0
    %270 = vmatprep.subr.mxu0 0.0
    %271 = vmatpush1.msra.mxu0 0.0
    %272 = vmatprep.subr.mxu0 0.0
    %273 = vmatpush1.msra.mxu0 0.0
    %274 = vmatprep.subr.mxu0 0.0
    %275 = vmatpush1.msra.mxu0 0.0
    %276 = vmatprep.subr.mxu0 0.0
    %277 = vmatpush1.msra.mxu0 0.0
    %278 = vmatprep.subr.mxu0 0.0
    %279 = vmatpush1.msra.mxu0 0.0
    %280 = vmatprep.subr.mxu0 0.0
    %281 = vmatpush1.msra.mxu0 0.0
    %282 = vmatprep.subr.mxu0 0.0
    %283 = vmatpush1.msra.mxu0 0.0
    %284 = vmatprep.subr.mxu0 0.0
    %285 = vmatpush1.msra.mxu0 0.0
    %286 = vmatprep.subr.mxu0 0.0
    %287 = vmatpush1.msra.mxu0 0.0
    %288 = vmatprep.subr.mxu0 0.0
    %289 = vmatpush1.msra.mxu0 0.0
    %290 = vmatprep.subr.mxu0 0.0
    %291 = vmatpush1.msra.mxu0 0.0
    %292 = vmatprep.subr.mxu0 0.0
    %293 = vmatpush1.msra.mxu0 0.0
    %294 = vmatprep.subr.mxu0 0.0
    %295 = vmatpush1.msra.mxu0 0.0
    %296 = vmatprep.subr.mxu0 0.0
    %297 = vmatpush1.msra.mxu0 0.0
    %298 = vmatprep.subr.mxu0 0.0
    %299 = vmatpush1.msra.mxu0 0.0
    %300 = vmatprep.subr.mxu0 0.0
    %301 = vmatpush1.msra.mxu0 0.0
    %302 = vmatprep.subr.mxu0 0.0
    %303 = vmatpush1.msra.mxu0 0.0
    %304 = vmatprep.subr.mxu0 0.0
    %305 = vmatpush1.msra.mxu0 0.0
    %306 = vmatprep.subr.mxu0 0.0
    %307 = vmatpush1.msra.mxu0 0.0
    %308 = vmatprep.subr.mxu0 0.0
    %309 = vmatpush1.msra.mxu0 0.0
    %310 = vmatprep.subr.mxu0 0.0
    %311 = vmatpush1.msra.mxu0 0.0
    %312 = vmatprep.subr.mxu0 0.0
    %313 = vmatpush1.msra.mxu0 0.0
    %314 = vmatprep.subr.mxu0 0.0
    %315 = vmatpush1.msra.mxu0 0.0
    %316 = vmatprep.subr.mxu0 0.0
    %317 = vmatpush1.msra.mxu0 0.0
    %318 = vmatprep.subr.mxu0 0.0
    %319 = vmatpush1.msra.mxu0 0.0
    %320 = vmatprep.subr.mxu0 0.0
    %321 = vmatpush1.msra.mxu0 0.0
    %322 = vmatprep.mubr.f32.mxu0 0.0
    %323 = vmatmul.mubr.f32.gmra.mrb[0].mxu0 %v256
    %v324 = vpop.f32.mrb[0].mxu0
    %v325 = vadd.f32 0.0, %v324
    %v326 = vpop.f32.mrb[0].mxu0
    %v327 = vadd.f32 0.0, %v326
    %328 = vdwg.mxu0
    %329 = vmatprep.subr.mxu0 0.0
    %330 = vmatpush1.xpose.msra.mxu0 %v172
    %331 = vmatprep.subr.mxu0 0.0
    %332 = vmatpush1.xpose.msra.mxu0 0.0
    %333 = vmatprep.subr.mxu0 0.0
    %334 = vmatpush1.xpose.msra.mxu0 0.0
    %335 = vmatprep.subr.mxu0 0.0
    %336 = vmatpush1.xpose.msra.mxu0 0.0
    %337 = vmatprep.subr.mxu0 0.0
    %338 = vmatpush1.xpose.msra.mxu0 0.0
    %339 = vmatprep.subr.mxu0 0.0
    %340 = vmatpush1.xpose.msra.mxu0 0.0
    %341 = vmatprep.subr.mxu0 0.0
    %342 = vmatpush1.xpose.msra.mxu0 0.0
    %343 = vmatprep.subr.mxu0 0.0
    %344 = vmatpush1.xpose.msra.mxu0 0.0
    %345 = vmatprep.subr.mxu0 0.0
    %346 = vmatpush1.xpose.msra.mxu0 0.0
    %347 = vmatprep.subr.mxu0 0.0
    %348 = vmatpush1.xpose.msra.mxu0 0.0
    %349 = vmatprep.subr.mxu0 0.0
    %350 = vmatpush1.xpose.msra.mxu0 0.0
    %351 = vmatprep.subr.mxu0 0.0
    %352 = vmatpush1.xpose.msra.mxu0 0.0
    %353 = vmatprep.subr.mxu0 0.0
    %354 = vmatpush1.xpose.msra.mxu0 0.0
    %355 = vmatprep.subr.mxu0 0.0
    %356 = vmatpush1.xpose.msra.mxu0 0.0
    %357 = vmatprep.subr.mxu0 0.0
    %358 = vmatpush1.xpose.msra.mxu0 0.0
    %359 = vmatprep.subr.mxu0 0.0
    %360 = vmatpush1.xpose.msra.mxu0 0.0
    %361 = vmatprep.subr.mxu0 0.0
    %362 = vmatpush1.xpose.msra.mxu0 0.0
    %363 = vmatprep.subr.mxu0 0.0
    %364 = vmatpush1.xpose.msra.mxu0 0.0
    %365 = vmatprep.subr.mxu0 0.0
    %366 = vmatpush1.xpose.msra.mxu0 0.0
    %367 = vmatprep.subr.mxu0 0.0
    %368 = vmatpush1.xpose.msra.mxu0 0.0
    %369 = vmatprep.subr.mxu0 0.0
    %370 = vmatpush1.xpose.msra.mxu0 0.0
    %371 = vmatprep.subr.mxu0 0.0
    %372 = vmatpush1.xpose.msra.mxu0 0.0
    %373 = vmatprep.subr.mxu0 0.0
    %374 = vmatpush1.xpose.msra.mxu0 0.0
    %375 = vmatprep.subr.mxu0 0.0
    %376 = vmatpush1.xpose.msra.mxu0 0.0
    %377 = vmatprep.subr.mxu0 0.0
    %378 = vmatpush1.xpose.msra.mxu0 0.0
    %379 = vmatprep.subr.mxu0 0.0
    %380 = vmatpush1.xpose.msra.mxu0 0.0
    %381 = vmatprep.subr.mxu0 0.0
    %382 = vmatpush1.xpose.msra.mxu0 0.0
    %383 = vmatprep.subr.mxu0 0.0
    %384 = vmatpush1.xpose.msra.mxu0 0.0
    %385 = vmatprep.subr.mxu0 0.0
    %386 = vmatpush1.xpose.msra.mxu0 0.0
    %387 = vmatprep.subr.mxu0 0.0
    %388 = vmatpush1.xpose.msra.mxu0 0.0
    %389 = vmatprep.subr.mxu0 0.0
    %390 = vmatpush1.xpose.msra.mxu0 0.0
    %391 = vmatprep.subr.mxu0 0.0
    %392 = vmatpush1.xpose.msra.mxu0 0.0
    %393 = vmatprep.mubr.f32.mxu0 0.0
    %394 = vmatmul.mubr.f32.gmra.mrb[0].mxu0 %v172
    %v395 = vpop.f32.mrb[0].mxu0
    %v396 = vadd.f32 0.0, %v395
    %v397 = vpop.f32.mrb[0].mxu0
    %398 = vdwg.mxu0
    %v399 = vsel %vm243, %v396, -inf
    %400 = vmax.xlane.f32.xlu0 %v399
    %v401 = vpop.xlane.xlu0 %400
    %v402 = vsub.f32 %v396, %v401
    %v403 = vmul.f32 %v402, 1.442695
    %v404 = vpow.pop %v403
    %v405 = vsel %vm243, %v404, 0.0
    %406 = vadd.xlane.f32.xlu0 %v405
    %v407 = vpop.xlane.xlu0 %406
    %v408 = vrcp.pop %v407
    %v409 = vmul.f32 %v404, %v408
    %v411 = vsel %vm243, %v409, 0
    %413 = vmatprep.subr.mxu0 0.0
    %414 = vmatpush1.msra.mxu0 %v172
    %415 = vmatprep.subr.mxu0 0.0
    %416 = vmatpush1.msra.mxu0 0.0
    %417 = vmatprep.subr.mxu0 0.0
    %418 = vmatpush1.msra.mxu0 0.0
    %419 = vmatprep.subr.mxu0 0.0
    %420 = vmatpush1.msra.mxu0 0.0
    %421 = vmatprep.subr.mxu0 0.0
    %422 = vmatpush1.msra.mxu0 0.0
    %423 = vmatprep.subr.mxu0 0.0
    %424 = vmatpush1.msra.mxu0 0.0
    %425 = vmatprep.subr.mxu0 0.0
    %426 = vmatpush1.msra.mxu0 0.0
    %427 = vmatprep.subr.mxu0 0.0
    %428 = vmatpush1.msra.mxu0 0.0
    %429 = vmatprep.subr.mxu0 0.0
    %430 = vmatpush1.msra.mxu0 0.0
    %431 = vmatprep.subr.mxu0 0.0
    %432 = vmatpush1.msra.mxu0 0.0
    %433 = vmatprep.subr.mxu0 0.0
    %434 = vmatpush1.msra.mxu0 0.0
    %435 = vmatprep.subr.mxu0 0.0
    %436 = vmatpush1.msra.mxu0 0.0
    %437 = vmatprep.subr.mxu0 0.0
    %438 = vmatpush1.msra.mxu0 0.0
    %439 = vmatprep.subr.mxu0 0.0
    %440 = vmatpush1.msra.mxu0 0.0
    %441 = vmatprep.subr.mxu0 0.0
    %442 = vmatpush1.msra.mxu0 0.0
    %443 = vmatprep.subr.mxu0 0.0
    %444 = vmatpush1.msra.mxu0 0.0
    %445 = vmatprep.subr.mxu0 0.0
    %446 = vmatpush1.msra.mxu0 0.0
    %447 = vmatprep.subr.mxu0 0.0
    %448 = vmatpush1.msra.mxu0 0.0
    %449 = vmatprep.subr.mxu0 0.0
    %450 = vmatpush1.msra.mxu0 0.0
    %451 = vmatprep.subr.mxu0 0.0
    %452 = vmatpush1.msra.mxu0 0.0
    %453 = vmatprep.subr.mxu0 0.0
    %454 = vmatpush1.msra.mxu0 0.0
    %455 = vmatprep.subr.mxu0 0.0
    %456 = vmatpush1.msra.mxu0 0.0
    %457 = vmatprep.subr.mxu0 0.0
    %458 = vmatpush1.msra.mxu0 0.0
    %459 = vmatprep.subr.mxu0 0.0
    %460 = vmatpush1.msra.mxu0 0.0
    %461 = vmatprep.subr.mxu0 0.0
    %462 = vmatpush1.msra.mxu0 0.0
    %463 = vmatprep.subr.mxu0 0.0
    %464 = vmatpush1.msra.mxu0 0.0
    %465 = vmatprep.subr.mxu0 0.0
    %466 = vmatpush1.msra.mxu0 0.0
    %467 = vmatprep.subr.mxu0 0.0
    %468 = vmatpush1.msra.mxu0 0.0
    %469 = vmatprep.subr.mxu0 0.0
    %470 = vmatpush1.msra.mxu0 0.0
    %471 = vmatprep.subr.mxu0 0.0
    %472 = vmatpush1.msra.mxu0 0.0
    %473 = vmatprep.subr.mxu0 0.0
    %474 = vmatpush1.msra.mxu0 0.0
    %475 = vmatprep.subr.mxu0 0.0
    %476 = vmatpush1.msra.mxu0 0.0
    %477 = vmatprep.mubr.f32.mxu0 0.0
    %478 = vmatmul.mubr.f32.gmra.mrb[0].mxu0 %v411
    %v479 = vpop.f32.mrb[0].mxu0
    %v480 = vadd.f32 0.0, %v479
    %v481 = vpop.f32.mrb[0].mxu0
    %482 = vdwg.mxu0
    %v483 = vpack.c.bf16 %v325, %v325
    %v484 = vpack.c.bf16 %v327, %v327
    %v485 = vpack.c.bf16 %v480, %v480
    %v486 = vld [vmem:[#allocation7] sm:$0xf]
    %v487 = vld [vmem:[#allocation7 + $0x4] sm:$0xf]
    %v488 = vld [vmem:[#allocation7 + $0x8] sm:$0xf]
    %v489 = vld [vmem:[#allocation7 + $0xc] sm:$0xf]
    %v490 = vld [vmem:[#allocation7 + $0x10] sm:$0xf]
    %v491 = vld [vmem:[#allocation7 + $0x14] sm:$0xf]
    %v492 = vld [vmem:[#allocation7 + $0x18] sm:$0xf]
    %v493 = vld [vmem:[#allocation7 + $0x1c] sm:$0xf]
    %v494 = vld [vmem:[#allocation7 + $0x20] sm:$0xf]
    %v495 = vld [vmem:[#allocation7 + $0x24] sm:$0xf]
    %v496 = vld [vmem:[#allocation7 + $0x28] sm:$0xf]
    %v497 = vld [vmem:[#allocation7 + $0x2c] sm:$0xf]
    %v498 = vld [vmem:[#allocation7 + $0x30] sm:$0xf]
    %v499 = vld [vmem:[#allocation7 + $0x34] sm:$0xf]
    %v500 = vld [vmem:[#allocation7 + $0x38] sm:$0xf]
    %v501 = vld [vmem:[#allocation7 + $0x3c] sm:$0xf]
    %v502 = vld [vmem:[#allocation7 + $0x40] sm:$0xf]
    %v503 = vld [vmem:[#allocation7 + $0x44] sm:$0xf]
    %v504 = vld [vmem:[#allocation7 + $0x48] sm:$0xf]
    %v505 = vld [vmem:[#allocation7 + $0x4c] sm:$0xf]
    %v506 = vld [vmem:[#allocation7 + $0x50] sm:$0xf]
    %v507 = vld [vmem:[#allocation7 + $0x54] sm:$0xf]
    %v508 = vld [vmem:[#allocation7 + $0x58] sm:$0xf]
    %v509 = vld [vmem:[#allocation7 + $0x5c] sm:$0xf]
    %v510 = vld [vmem:[#allocation7 + $0x60] sm:$0xf]
    %v511 = vld [vmem:[#allocation7 + $0x64] sm:$0xf]
    %v512 = vld [vmem:[#allocation7 + $0x68] sm:$0xf]
    %v513 = vld [vmem:[#allocation7 + $0x6c] sm:$0xf]
    %v514 = vld [vmem:[#allocation7 + $0x70] sm:$0xf]
    %v515 = vld [vmem:[#allocation7 + $0x74] sm:$0xf]
    %v516 = vld [vmem:[#allocation7 + $0x78] sm:$0xf]
    %v517 = vld [vmem:[#allocation7 + $0x7c] sm:$0xf]
    %v518 = vld [vmem:[%s3] sm:$0x1]
    %v520 = vlaneseq
    %v521 = vshrl.u32 %v520, 7
    %v522 = vsub.s32 0, %v521
    %v523 = vrot.slane %v518, %v522
    %v557 = vunpack.c.l.b16 %v486
    %v558 = vunpack.c.l.b16 %v487
    %v559 = vunpack.c.l.b16 %v488
    %v560 = vunpack.c.l.b16 %v489
    %v561 = vunpack.c.l.b16 %v490
    %v562 = vunpack.c.l.b16 %v491
    %v563 = vunpack.c.l.b16 %v492
    %v564 = vunpack.c.l.b16 %v493
    %v565 = vunpack.c.l.b16 %v494
    %v566 = vunpack.c.l.b16 %v495
    %v567 = vunpack.c.l.b16 %v496
    %v568 = vunpack.c.l.b16 %v497
    %v569 = vunpack.c.l.b16 %v498
    %v570 = vunpack.c.l.b16 %v499
    %v571 = vunpack.c.l.b16 %v500
    %v572 = vunpack.c.l.b16 %v501
    %v573 = vunpack.c.l.b16 %v502
    %v574 = vunpack.c.l.b16 %v503
    %v575 = vunpack.c.l.b16 %v504
    %v576 = vunpack.c.l.b16 %v505
    %v577 = vunpack.c.l.b16 %v506
    %v578 = vunpack.c.l.b16 %v507
    %v579 = vunpack.c.l.b16 %v508
    %v580 = vunpack.c.l.b16 %v509
    %v581 = vunpack.c.l.b16 %v510
    %v582 = vunpack.c.l.b16 %v511
    %v583 = vunpack.c.l.b16 %v512
    %v584 = vunpack.c.l.b16 %v513
    %v585 = vunpack.c.l.b16 %v514
    %v586 = vunpack.c.l.b16 %v515
    %v587 = vunpack.c.l.b16 %v516
    %v588 = vunpack.c.l.b16 %v517
    %v589 = vpack.c.b16 %v558, %v557
    %v590 = vpack.c.b16 %v560, %v559
    %v591 = vpack.c.b16 %v562, %v561
    %v592 = vpack.c.b16 %v564, %v563
    %v593 = vpack.c.b16 %v566, %v565
    %v594 = vpack.c.b16 %v568, %v567
    %v595 = vpack.c.b16 %v570, %v569
    %v596 = vpack.c.b16 %v572, %v571
    %v597 = vpack.c.b16 %v574, %v573
    %v598 = vpack.c.b16 %v576, %v575
    %v599 = vpack.c.b16 %v578, %v577
    %v600 = vpack.c.b16 %v580, %v579
    %v601 = vpack.c.b16 %v582, %v581
    %v602 = vpack.c.b16 %v584, %v583
    %v603 = vpack.c.b16 %v586, %v585
    %v604 = vpack.c.b16 %v588, %v587
    %621 = vmatprep.subr.bf16.mxu0 0
    %622 = vmatpush1.bf16.msra.mxu0 %v589
    %623 = vmatprep.subr.bf16.mxu0 0
    %624 = vmatpush1.bf16.msra.mxu0 %v590
    %625 = vmatprep.subr.bf16.mxu0 0
    %626 = vmatpush1.bf16.msra.mxu0 %v591
    %627 = vmatprep.subr.bf16.mxu0 0
    %628 = vmatpush1.bf16.msra.mxu0 %v592
    %629 = vmatprep.subr.bf16.mxu0 0
    %630 = vmatpush1.bf16.msra.mxu0 %v593
    %631 = vmatprep.subr.bf16.mxu0 0
    %632 = vmatpush1.bf16.msra.mxu0 %v594
    %633 = vmatprep.subr.bf16.mxu0 0
    %634 = vmatpush1.bf16.msra.mxu0 %v595
    %635 = vmatprep.subr.bf16.mxu0 0
    %636 = vmatpush1.bf16.msra.mxu0 %v596
    %637 = vmatprep.subr.bf16.mxu0 0
    %638 = vmatpush1.bf16.msra.mxu0 %v597
    %639 = vmatprep.subr.bf16.mxu0 0
    %640 = vmatpush1.bf16.msra.mxu0 %v598
    %641 = vmatprep.subr.bf16.mxu0 0
    %642 = vmatpush1.bf16.msra.mxu0 %v599
    %643 = vmatprep.subr.bf16.mxu0 0
    %644 = vmatpush1.bf16.msra.mxu0 %v600
    %645 = vmatprep.subr.bf16.mxu0 0
    %646 = vmatpush1.bf16.msra.mxu0 %v601
    %647 = vmatprep.subr.bf16.mxu0 0
    %648 = vmatpush1.bf16.msra.mxu0 %v602
    %649 = vmatprep.subr.bf16.mxu0 0
    %650 = vmatpush1.bf16.msra.mxu0 %v603
    %651 = vmatprep.subr.bf16.mxu0 0
    %652 = vmatpush1.bf16.msra.mxu0 %v604
    %653 = vmatprep.mubr.bf16.mxu0 %v484
    %654 = vmatmul.mubr.bf16.gmra.mrb[0].mxu0 %v483
    %v655 = vpop.f32.mrb[0].mxu0
    %v656 = vadd.f32 %v523, %v655
    %v657 = vpop.f32.mrb[0].mxu0
    %v658 = vpop.f32.mrb[0].mxu0
    %v659 = vpop.f32.mrb[0].mxu0
    %660 = vdwg.mxu0
    %v661 = vmax.f32 %v656, 0.0
    %v662 = vld [vmem:[#allocation8] sm:$0xf]
    %v663 = vld [vmem:[#allocation8 + $0x4] sm:$0xf]
    %v664 = vld [vmem:[#allocation8 + $0x8] sm:$0xf]
    %v665 = vld [vmem:[#allocation8 + $0xc] sm:$0xf]
    %v666 = vld [vmem:[#allocation8 + $0x10] sm:$0xf]
    %v667 = vld [vmem:[#allocation8 + $0x14] sm:$0xf]
    %v668 = vld [vmem:[#allocation8 + $0x18] sm:$0xf]
    %v669 = vld [vmem:[#allocation8 + $0x1c] sm:$0xf]
    %v670 = vld [vmem:[#allocation8 + $0x20] sm:$0xf]
    %v671 = vld [vmem:[#allocation8 + $0x24] sm:$0xf]
    %v672 = vld [vmem:[#allocation8 + $0x28] sm:$0xf]
    %v673 = vld [vmem:[#allocation8 + $0x2c] sm:$0xf]
    %v674 = vld [vmem:[#allocation8 + $0x30] sm:$0xf]
    %v675 = vld [vmem:[#allocation8 + $0x34] sm:$0xf]
    %v676 = vld [vmem:[#allocation8 + $0x38] sm:$0xf]
    %v677 = vld [vmem:[#allocation8 + $0x3c] sm:$0xf]
    %v678 = vld [vmem:[%s5] sm:$0x1]
    %v680 = vlaneseq
    %v681 = vshrl.u32 %v680, 7
    %v682 = vsub.s32 0, %v681
    %v683 = vrot.slane %v678, %v682
    %v701 = vunpack.c.l.b16 %v662
    %v702 = vunpack.c.l.b16 %v663
    %v703 = vunpack.c.l.b16 %v664
    %v704 = vunpack.c.l.b16 %v665
    %v705 = vunpack.c.l.b16 %v666
    %v706 = vunpack.c.l.b16 %v667
    %v707 = vunpack.c.l.b16 %v668
    %v708 = vunpack.c.l.b16 %v669
    %v709 = vunpack.c.l.b16 %v670
    %v710 = vunpack.c.l.b16 %v671
    %v711 = vunpack.c.l.b16 %v672
    %v712 = vunpack.c.l.b16 %v673
    %v713 = vunpack.c.l.b16 %v674
    %v714 = vunpack.c.l.b16 %v675
    %v715 = vunpack.c.l.b16 %v676
    %v716 = vunpack.c.l.b16 %v677
    %v717 = vpack.c.b16 %v702, %v701
    %v718 = vpack.c.b16 %v704, %v703
    %v719 = vpack.c.b16 %v706, %v705
    %v720 = vpack.c.b16 %v708, %v707
    %v721 = vpack.c.b16 %v710, %v709
    %v722 = vpack.c.b16 %v712, %v711
    %v723 = vpack.c.b16 %v714, %v713
    %v724 = vpack.c.b16 %v716, %v715
    %733 = vmatprep.subr.bf16.mxu0 0
    %734 = vmatpush1.bf16.msra.mxu0 %v717
    %735 = vmatprep.subr.bf16.mxu0 0
    %736 = vmatpush1.bf16.msra.mxu0 %v718
    %737 = vmatprep.subr.bf16.mxu0 0
    %738 = vmatpush1.bf16.msra.mxu0 %v719
    %739 = vmatprep.subr.bf16.mxu0 0
    %740 = vmatpush1.bf16.msra.mxu0 %v720
    %741 = vmatprep.subr.bf16.mxu0 0
    %742 = vmatpush1.bf16.msra.mxu0 %v721
    %743 = vmatprep.subr.bf16.mxu0 0
    %744 = vmatpush1.bf16.msra.mxu0 %v722
    %745 = vmatprep.subr.bf16.mxu0 0
    %746 = vmatpush1.bf16.msra.mxu0 %v723
    %747 = vmatprep.subr.bf16.mxu0 0
    %748 = vmatpush1.bf16.msra.mxu0 %v724
    %749 = vmatprep.subr.bf16.mxu0 0
    %750 = vmatpush1.bf16.msra.mxu0 0
    %751 = vmatprep.subr.bf16.mxu0 0
    %752 = vmatpush1.bf16.msra.mxu0 0
    %753 = vmatprep.subr.bf16.mxu0 0
    %754 = vmatpush1.bf16.msra.mxu0 0
    %755 = vmatprep.subr.bf16.mxu0 0
    %756 = vmatpush1.bf16.msra.mxu0 0
    %757 = vmatprep.subr.bf16.mxu0 0
    %758 = vmatpush1.bf16.msra.mxu0 0
    %759 = vmatprep.subr.bf16.mxu0 0
    %760 = vmatpush1.bf16.msra.mxu0 0
    %761 = vmatprep.subr.bf16.mxu0 0
    %762 = vmatpush1.bf16.msra.mxu0 0
    %763 = vmatprep.subr.bf16.mxu0 0
    %764 = vmatpush1.bf16.msra.mxu0 0
    %765 = vmatprep.mubr.bf16.mxu0 0
    %766 = vmatmul.mubr.bf16.gmra.mrb[0].mxu0 %v485
    %v767 = vpop.f32.mrb[0].mxu0
    %v768 = vadd.f32 %v683, %v767
    %v769 = vpop.f32.mrb[0].mxu0
    %v770 = vpop.f32.mrb[0].mxu0
    %v771 = vpop.f32.mrb[0].mxu0
    %772 = vdwg.mxu0
    %v773 = vmax.f32 %v768, 0.0
    %v774 = vld [vmem:[#allocation11] sm:$0xf]
    %v775 = vld [vmem:[#allocation11 + $0x4] sm:$0xf]
    %v776 = vld [vmem:[#allocation11 + $0x8] sm:$0xf]
    %v777 = vld [vmem:[#allocation11 + $0xc] sm:$0xf]
    %v778 = vld [vmem:[#allocation11 + $0x10] sm:$0xf]
    %v779 = vld [vmem:[#allocation11 + $0x14] sm:$0xf]
    %v780 = vld [vmem:[#allocation11 + $0x18] sm:$0xf]
    %v781 = vld [vmem:[#allocation11 + $0x1c] sm:$0xf]
    %v782 = vld [vmem:[#allocation11 + $0x20] sm:$0xf]
    %v783 = vld [vmem:[#allocation11 + $0x24] sm:$0xf]
    %v784 = vld [vmem:[#allocation11 + $0x28] sm:$0xf]
    %v785 = vld [vmem:[#allocation11 + $0x2c] sm:$0xf]
    %v786 = vld [vmem:[#allocation11 + $0x30] sm:$0xf]
    %v787 = vld [vmem:[#allocation11 + $0x34] sm:$0xf]
    %v788 = vld [vmem:[#allocation11 + $0x38] sm:$0xf]
    %v789 = vld [vmem:[#allocation11 + $0x3c] sm:$0xf]
    %v790 = vld [vmem:[%s9] sm:$0x1]
    %v792 = vlaneseq
    %v793 = vshrl.u32 %v792, 7
    %v794 = vsub.s32 0, %v793
    %v795 = vrot.slane %v790, %v794
    %v813 = vunpack.c.l.b16 %v774
    %v814 = vunpack.c.l.b16 %v775
    %v815 = vunpack.c.l.b16 %v776
    %v816 = vunpack.c.l.b16 %v777
    %v817 = vunpack.c.l.b16 %v778
    %v818 = vunpack.c.l.b16 %v779
    %v819 = vunpack.c.l.b16 %v780
    %v820 = vunpack.c.l.b16 %v781
    %v821 = vunpack.c.l.b16 %v782
    %v822 = vunpack.c.l.b16 %v783
    %v823 = vunpack.c.l.b16 %v784
    %v824 = vunpack.c.l.b16 %v785
    %v825 = vunpack.c.l.b16 %v786
    %v826 = vunpack.c.l.b16 %v787
    %v827 = vunpack.c.l.b16 %v788
    %v828 = vunpack.c.l.b16 %v789
    %v829 = vpack.c.b16 %v814, %v813
    %v830 = vpack.c.b16 %v816, %v815
    %v831 = vpack.c.b16 %v818, %v817
    %v832 = vpack.c.b16 %v820, %v819
    %v833 = vpack.c.b16 %v822, %v821
    %v834 = vpack.c.b16 %v824, %v823
    %v835 = vpack.c.b16 %v826, %v825
    %v836 = vpack.c.b16 %v828, %v827
    %845 = vmatprep.subr.bf16.mxu0 0
    %846 = vmatpush1.bf16.msra.mxu0 %v829
    %847 = vmatprep.subr.bf16.mxu0 0
    %848 = vmatpush1.bf16.msra.mxu0 %v830
    %849 = vmatprep.subr.bf16.mxu0 0
    %850 = vmatpush1.bf16.msra.mxu0 %v831
    %851 = vmatprep.subr.bf16.mxu0 0
    %852 = vmatpush1.bf16.msra.mxu0 %v832
    %853 = vmatprep.subr.bf16.mxu0 0
    %854 = vmatpush1.bf16.msra.mxu0 %v833
    %855 = vmatprep.subr.bf16.mxu0 0
    %856 = vmatpush1.bf16.msra.mxu0 %v834
    %857 = vmatprep.subr.bf16.mxu0 0
    %858 = vmatpush1.bf16.msra.mxu0 %v835
    %859 = vmatprep.subr.bf16.mxu0 0
    %860 = vmatpush1.bf16.msra.mxu0 %v836
    %861 = vmatprep.subr.bf16.mxu0 0
    %862 = vmatpush1.bf16.msra.mxu0 0
    %863 = vmatprep.subr.bf16.mxu0 0
    %864 = vmatpush1.bf16.msra.mxu0 0
    %865 = vmatprep.subr.bf16.mxu0 0
    %866 = vmatpush1.bf16.msra.mxu0 0
    %867 = vmatprep.subr.bf16.mxu0 0
    %868 = vmatpush1.bf16.msra.mxu0 0
    %869 = vmatprep.subr.bf16.mxu0 0
    %870 = vmatpush1.bf16.msra.mxu0 0
    %871 = vmatprep.subr.bf16.mxu0 0
    %872 = vmatpush1.bf16.msra.mxu0 0
    %873 = vmatprep.subr.bf16.mxu0 0
    %874 = vmatpush1.bf16.msra.mxu0 0
    %875 = vmatprep.subr.bf16.mxu0 0
    %876 = vmatpush1.bf16.msra.mxu0 0
    %877 = vmatprep.mubr.bf16.mxu0 0
    %878 = vmatmul.mubr.bf16.gmra.mrb[0].mxu0 %v485
    %v879 = vpop.f32.mrb[0].mxu0
    %v880 = vadd.f32 %v795, %v879
    %v881 = vpop.f32.mrb[0].mxu0
    %v882 = vpop.f32.mrb[0].mxu0
    %v883 = vpop.f32.mrb[0].mxu0
    %884 = vdwg.mxu0
    %v885 = vxor.u32 %v880, 2147483648
    %v886 = vmul.f32 %v885, 1.442695
    %v887 = vpow.pop %v886
    %v888 = vadd.f32 %v887, 1.0
    %v889 = vrcp.pop %v888
    %v890 = vmul.f32 1.0, %v889
    %v891 = vld [vmem:[#allocation10] sm:$0xf]
    %v892 = vld [vmem:[#allocation10 + $0x4] sm:$0xf]
    %v893 = vld [vmem:[#allocation10 + $0x8] sm:$0xf]
    %v894 = vld [vmem:[#allocation10 + $0xc] sm:$0xf]
    %v895 = vld [vmem:[#allocation10 + $0x10] sm:$0xf]
    %v896 = vld [vmem:[#allocation10 + $0x14] sm:$0xf]
    %v897 = vld [vmem:[#allocation10 + $0x18] sm:$0xf]
    %v898 = vld [vmem:[#allocation10 + $0x1c] sm:$0xf]
    %v899 = vld [vmem:[#allocation10 + $0x20] sm:$0xf]
    %v900 = vld [vmem:[#allocation10 + $0x24] sm:$0xf]
    %v901 = vld [vmem:[#allocation10 + $0x28] sm:$0xf]
    %v902 = vld [vmem:[#allocation10 + $0x2c] sm:$0xf]
    %v903 = vld [vmem:[#allocation10 + $0x30] sm:$0xf]
    %v904 = vld [vmem:[#allocation10 + $0x34] sm:$0xf]
    %v905 = vld [vmem:[#allocation10 + $0x38] sm:$0xf]
    %v906 = vld [vmem:[#allocation10 + $0x3c] sm:$0xf]
    %v907 = vld [vmem:[#allocation10 + $0x40] sm:$0xf]
    %v908 = vld [vmem:[#allocation10 + $0x44] sm:$0xf]
    %v909 = vld [vmem:[#allocation10 + $0x48] sm:$0xf]
    %v910 = vld [vmem:[#allocation10 + $0x4c] sm:$0xf]
    %v911 = vld [vmem:[#allocation10 + $0x50] sm:$0xf]
    %v912 = vld [vmem:[#allocation10 + $0x54] sm:$0xf]
    %v913 = vld [vmem:[#allocation10 + $0x58] sm:$0xf]
    %v914 = vld [vmem:[#allocation10 + $0x5c] sm:$0xf]
    %v915 = vld [vmem:[#allocation10 + $0x60] sm:$0xf]
    %v916 = vld [vmem:[#allocation10 + $0x64] sm:$0xf]
    %v917 = vld [vmem:[#allocation10 + $0x68] sm:$0xf]
    %v918 = vld [vmem:[#allocation10 + $0x6c] sm:$0xf]
    %v919 = vld [vmem:[#allocation10 + $0x70] sm:$0xf]
    %v920 = vld [vmem:[#allocation10 + $0x74] sm:$0xf]
    %v921 = vld [vmem:[#allocation10 + $0x78] sm:$0xf]
    %v922 = vld [vmem:[#allocation10 + $0x7c] sm:$0xf]
    %v923 = vld [vmem:[%s7] sm:$0x1]
    %v925 = vlaneseq
    %v926 = vshrl.u32 %v925, 7
    %v927 = vsub.s32 0, %v926
    %v928 = vrot.slane %v923, %v927
    %v962 = vunpack.c.l.b16 %v891
    %v963 = vunpack.c.l.b16 %v892
    %v964 = vunpack.c.l.b16 %v893
    %v965 = vunpack.c.l.b16 %v894
    %v966 = vunpack.c.l.b16 %v895
    %v967 = vunpack.c.l.b16 %v896
    %v968 = vunpack.c.l.b16 %v897
    %v969 = vunpack.c.l.b16 %v898
    %v970 = vunpack.c.l.b16 %v899
    %v971 = vunpack.c.l.b16 %v900
    %v972 = vunpack.c.l.b16 %v901
    %v973 = vunpack.c.l.b16 %v902
    %v974 = vunpack.c.l.b16 %v903
    %v975 = vunpack.c.l.b16 %v904
    %v976 = vunpack.c.l.b16 %v905
    %v977 = vunpack.c.l.b16 %v906
    %v978 = vunpack.c.l.b16 %v907
    %v979 = vunpack.c.l.b16 %v908
    %v980 = vunpack.c.l.b16 %v909
    %v981 = vunpack.c.l.b16 %v910
    %v982 = vunpack.c.l.b16 %v911
    %v983 = vunpack.c.l.b16 %v912
    %v984 = vunpack.c.l.b16 %v913
    %v985 = vunpack.c.l.b16 %v914
    %v986 = vunpack.c.l.b16 %v915
    %v987 = vunpack.c.l.b16 %v916
    %v988 = vunpack.c.l.b16 %v917
    %v989 = vunpack.c.l.b16 %v918
    %v990 = vunpack.c.l.b16 %v919
    %v991 = vunpack.c.l.b16 %v920
    %v992 = vunpack.c.l.b16 %v921
    %v993 = vunpack.c.l.b16 %v922
    %v994 = vpack.c.b16 %v963, %v962
    %v995 = vpack.c.b16 %v965, %v964
    %v996 = vpack.c.b16 %v967, %v966
    %v997 = vpack.c.b16 %v969, %v968
    %v998 = vpack.c.b16 %v971, %v970
    %v999 = vpack.c.b16 %v973, %v972
    %v1000 = vpack.c.b16 %v975, %v974
    %v1001 = vpack.c.b16 %v977, %v976
    %v1002 = vpack.c.b16 %v979, %v978
    %v1003 = vpack.c.b16 %v981, %v980
    %v1004 = vpack.c.b16 %v983, %v982
    %v1005 = vpack.c.b16 %v985, %v984
    %v1006 = vpack.c.b16 %v987, %v986
    %v1007 = vpack.c.b16 %v989, %v988
    %v1008 = vpack.c.b16 %v991, %v990
    %v1009 = vpack.c.b16 %v993, %v992
    %1026 = vmatprep.subr.bf16.mxu0 0
    %1027 = vmatpush1.bf16.msra.mxu0 %v994
    %1028 = vmatprep.subr.bf16.mxu0 0
    %1029 = vmatpush1.bf16.msra.mxu0 %v995
    %1030 = vmatprep.subr.bf16.mxu0 0
    %1031 = vmatpush1.bf16.msra.mxu0 %v996
    %1032 = vmatprep.subr.bf16.mxu0 0
    %1033 = vmatpush1.bf16.msra.mxu0 %v997
    %1034 = vmatprep.subr.bf16.mxu0 0
    %1035 = vmatpush1.bf16.msra.mxu0 %v998
    %1036 = vmatprep.subr.bf16.mxu0 0
    %1037 = vmatpush1.bf16.msra.mxu0 %v999
    %1038 = vmatprep.subr.bf16.mxu0 0
    %1039 = vmatpush1.bf16.msra.mxu0 %v1000
    %1040 = vmatprep.subr.bf16.mxu0 0
    %1041 = vmatpush1.bf16.msra.mxu0 %v1001
    %1042 = vmatprep.subr.bf16.mxu0 0
    %1043 = vmatpush1.bf16.msra.mxu0 %v1002
    %1044 = vmatprep.subr.bf16.mxu0 0
    %1045 = vmatpush1.bf16.msra.mxu0 %v1003
    %1046 = vmatprep.subr.bf16.mxu0 0
    %1047 = vmatpush1.bf16.msra.mxu0 %v1004
    %1048 = vmatprep.subr.bf16.mxu0 0
    %1049 = vmatpush1.bf16.msra.mxu0 %v1005
    %1050 = vmatprep.subr.bf16.mxu0 0
    %1051 = vmatpush1.bf16.msra.mxu0 %v1006
    %1052 = vmatprep.subr.bf16.mxu0 0
    %1053 = vmatpush1.bf16.msra.mxu0 %v1007
    %1054 = vmatprep.subr.bf16.mxu0 0
    %1055 = vmatpush1.bf16.msra.mxu0 %v1008
    %1056 = vmatprep.subr.bf16.mxu0 0
    %1057 = vmatpush1.bf16.msra.mxu0 %v1009
    %1058 = vmatprep.mubr.bf16.mxu0 %v484
    %1059 = vmatmul.mubr.bf16.gmra.mrb[0].mxu0 %v483
    %v1060 = vpop.f32.mrb[0].mxu0
    %v1061 = vadd.f32 %v928, %v1060
    %v1062 = vpop.f32.mrb[0].mxu0
    %v1063 = vpop.f32.mrb[0].mxu0
    %v1064 = vpop.f32.mrb[0].mxu0
    %1065 = vdwg.mxu0
    %v1066 = vxor.u32 %v1061, 2147483648
    %v1067 = vmul.f32 %v1066, 1.442695
    %v1068 = vpow.pop %v1067
    %v1069 = vadd.f32 %v1068, 1.0
    %v1070 = vrcp.pop %v1069
    %v1071 = vmul.f32 1.0, %v1070
    %v1072 = vmul.f32 %v890, %v661
    %v1073 = vpack.c.bf16 %v1072, %v1072
    %v1074 = vmul.f32 %v1071, %v773
    %v1075 = vpack.c.bf16 %v1074, %v1074
    %v1076 = vld [vmem:[#allocation13] sm:$0xff]
    %v1077 = vld [vmem:[#allocation13 + $0x8] sm:$0xff]
    %v1078 = vld [vmem:[#allocation13 + $0x10] sm:$0xff]
    %v1079 = vld [vmem:[#allocation13 + $0x18] sm:$0xff]
    %v1080 = vld [vmem:[#allocation13 + $0x20] sm:$0xff]
    %v1081 = vld [vmem:[#allocation13 + $0x28] sm:$0xff]
    %v1082 = vld [vmem:[#allocation13 + $0x30] sm:$0xff]
    %v1083 = vld [vmem:[#allocation13 + $0x38] sm:$0xff]
    %v1084 = vld [vmem:[#allocation13 + $0x40] sm:$0xff]
    %v1085 = vld [vmem:[#allocation13 + $0x48] sm:$0xff]
    %v1086 = vld [vmem:[#allocation13 + $0x50] sm:$0xff]
    %v1087 = vld [vmem:[#allocation13 + $0x58] sm:$0xff]
    %v1088 = vld [vmem:[#allocation13 + $0x60] sm:$0xff]
    %v1089 = vld [vmem:[#allocation13 + $0x68] sm:$0xff]
    %v1090 = vld [vmem:[#allocation13 + $0x70] sm:$0xff]
    %v1091 = vld [vmem:[#allocation13 + $0x78] sm:$0xff]
    %v1092 = vld [vmem:[#allocation14] sm:$0xff]
    %v1093 = vld [vmem:[#allocation14 + $0x8] sm:$0xff]
    %v1094 = vld [vmem:[#allocation14 + $0x10] sm:$0xff]
    %v1095 = vld [vmem:[#allocation14 + $0x18] sm:$0xff]
    %v1096 = vld [vmem:[#allocation14 + $0x20] sm:$0xff]
    %v1097 = vld [vmem:[#allocation14 + $0x28] sm:$0xff]
    %v1098 = vld [vmem:[#allocation14 + $0x30] sm:$0xff]
    %v1099 = vld [vmem:[#allocation14 + $0x38] sm:$0xff]
    %v1100 = vld [vmem:[#allocation14 + $0x40] sm:$0xff]
    %v1101 = vld [vmem:[#allocation14 + $0x48] sm:$0xff]
    %v1102 = vld [vmem:[#allocation14 + $0x50] sm:$0xff]
    %v1103 = vld [vmem:[#allocation14 + $0x58] sm:$0xff]
    %v1104 = vld [vmem:[#allocation14 + $0x60] sm:$0xff]
    %v1105 = vld [vmem:[#allocation14 + $0x68] sm:$0xff]
    %v1106 = vld [vmem:[#allocation14 + $0x70] sm:$0xff]
    %v1107 = vld [vmem:[#allocation14 + $0x78] sm:$0xff]
    %v1124 = vunpack.c.l.b16 %v1092
    %v1125 = vunpack.c.h.b16 %v1092
    %v1126 = vunpack.c.l.b16 %v1093
    %v1127 = vunpack.c.h.b16 %v1093
    %v1128 = vunpack.c.l.b16 %v1094
    %v1129 = vunpack.c.h.b16 %v1094
    %v1130 = vunpack.c.l.b16 %v1095
    %v1131 = vunpack.c.h.b16 %v1095
    %v1132 = vunpack.c.l.b16 %v1096
    %v1133 = vunpack.c.h.b16 %v1096
    %v1134 = vunpack.c.l.b16 %v1097
    %v1135 = vunpack.c.h.b16 %v1097
    %v1136 = vunpack.c.l.b16 %v1098
    %v1137 = vunpack.c.h.b16 %v1098
    %v1138 = vunpack.c.l.b16 %v1099
    %v1139 = vunpack.c.h.b16 %v1099
    %v1140 = vunpack.c.l.b16 %v1100
    %v1141 = vunpack.c.h.b16 %v1100
    %v1142 = vunpack.c.l.b16 %v1101
    %v1143 = vunpack.c.h.b16 %v1101
    %v1144 = vunpack.c.l.b16 %v1102
    %v1145 = vunpack.c.h.b16 %v1102
    %v1146 = vunpack.c.l.b16 %v1103
    %v1147 = vunpack.c.h.b16 %v1103
    %v1148 = vunpack.c.l.b16 %v1104
    %v1149 = vunpack.c.h.b16 %v1104
    %v1150 = vunpack.c.l.b16 %v1105
    %v1151 = vunpack.c.h.b16 %v1105
    %v1152 = vunpack.c.l.b16 %v1106
    %v1153 = vunpack.c.h.b16 %v1106
    %v1154 = vunpack.c.l.b16 %v1107
    %v1155 = vunpack.c.h.b16 %v1107
    %v1156 = vpack.c.b16 %v1126, %v1124
    %v1157 = vpack.c.b16 %v1127, %v1125
    %v1158 = vpack.c.b16 %v1130, %v1128
    %v1159 = vpack.c.b16 %v1131, %v1129
    %v1160 = vpack.c.b16 %v1134, %v1132
    %v1161 = vpack.c.b16 %v1135, %v1133
    %v1162 = vpack.c.b16 %v1138, %v1136
    %v1163 = vpack.c.b16 %v1139, %v1137
    %v1164 = vpack.c.b16 %v1142, %v1140
    %v1165 = vpack.c.b16 %v1143, %v1141
    %v1166 = vpack.c.b16 %v1146, %v1144
    %v1167 = vpack.c.b16 %v1147, %v1145
    %v1168 = vpack.c.b16 %v1150, %v1148
    %v1169 = vpack.c.b16 %v1151, %v1149
    %v1170 = vpack.c.b16 %v1154, %v1152
    %v1171 = vpack.c.b16 %v1155, %v1153
    %1188 = vmatprep.subr.bf16.mxu0 %v1157
    %1189 = vmatpush1.bf16.msra.mxu0 %v1156
    %1190 = vmatprep.subr.bf16.mxu0 %v1159
    %1191 = vmatpush1.bf16.msra.mxu0 %v1158
    %1192 = vmatprep.subr.bf16.mxu0 %v1161
    %1193 = vmatpush1.bf16.msra.mxu0 %v1160
    %1194 = vmatprep.subr.bf16.mxu0 %v1163
    %1195 = vmatpush1.bf16.msra.mxu0 %v1162
    %1196 = vmatprep.subr.bf16.mxu0 %v1165
    %1197 = vmatpush1.bf16.msra.mxu0 %v1164
    %1198 = vmatprep.subr.bf16.mxu0 %v1167
    %1199 = vmatpush1.bf16.msra.mxu0 %v1166
    %1200 = vmatprep.subr.bf16.mxu0 %v1169
    %1201 = vmatpush1.bf16.msra.mxu0 %v1168
    %1202 = vmatprep.subr.bf16.mxu0 %v1171
    %1203 = vmatpush1.bf16.msra.mxu0 %v1170
    %1204 = vmatprep.subr.bf16.mxu0 0
    %1205 = vmatpush1.bf16.msra.mxu0 0
    %1206 = vmatprep.subr.bf16.mxu0 0
    %1207 = vmatpush1.bf16.msra.mxu0 0
    %1208 = vmatprep.subr.bf16.mxu0 0
    %1209 = vmatpush1.bf16.msra.mxu0 0
    %1210 = vmatprep.subr.bf16.mxu0 0
    %1211 = vmatpush1.bf16.msra.mxu0 0
    %1212 = vmatprep.subr.bf16.mxu0 0
    %1213 = vmatpush1.bf16.msra.mxu0 0
    %1214 = vmatprep.subr.bf16.mxu0 0
    %1215 = vmatpush1.bf16.msra.mxu0 0
    %1216 = vmatprep.subr.bf16.mxu0 0
    %1217 = vmatpush1.bf16.msra.mxu0 0
    %1218 = vmatprep.subr.bf16.mxu0 0
    %1219 = vmatpush1.bf16.msra.mxu0 0
    %1220 = vmatprep.mubr.bf16.mxu0 0
    %1221 = vmatmul.mubr.bf16.gmra.mrb[0].mxu0 %v1075
    %v1222 = vpop.f32.mrb[0].mxu0
    %v1223 = vadd.f32 0.0, %v1222
    %v1224 = vpop.f32.mrb[0].mxu0
    %v1225 = vadd.f32 0.0, %v1224
    %v1226 = vpop.f32.mrb[0].mxu0
    %v1227 = vpop.f32.mrb[0].mxu0
    %1228 = vdwg.mxu0
    %v1245 = vunpack.c.l.b16 %v1076
    %v1246 = vunpack.c.h.b16 %v1076
    %v1247 = vunpack.c.l.b16 %v1077
    %v1248 = vunpack.c.h.b16 %v1077
    %v1249 = vunpack.c.l.b16 %v1078
    %v1250 = vunpack.c.h.b16 %v1078
    %v1251 = vunpack.c.l.b16 %v1079
    %v1252 = vunpack.c.h.b16 %v1079
    %v1253 = vunpack.c.l.b16 %v1080
    %v1254 = vunpack.c.h.b16 %v1080
    %v1255 = vunpack.c.l.b16 %v1081
    %v1256 = vunpack.c.h.b16 %v1081
    %v1257 = vunpack.c.l.b16 %v1082
    %v1258 = vunpack.c.h.b16 %v1082
    %v1259 = vunpack.c.l.b16 %v1083
    %v1260 = vunpack.c.h.b16 %v1083
    %v1261 = vunpack.c.l.b16 %v1084
    %v1262 = vunpack.c.h.b16 %v1084
    %v1263 = vunpack.c.l.b16 %v1085
    %v1264 = vunpack.c.h.b16 %v1085
    %v1265 = vunpack.c.l.b16 %v1086
    %v1266 = vunpack.c.h.b16 %v1086
    %v1267 = vunpack.c.l.b16 %v1087
    %v1268 = vunpack.c.h.b16 %v1087
    %v1269 = vunpack.c.l.b16 %v1088
    %v1270 = vunpack.c.h.b16 %v1088
    %v1271 = vunpack.c.l.b16 %v1089
    %v1272 = vunpack.c.h.b16 %v1089
    %v1273 = vunpack.c.l.b16 %v1090
    %v1274 = vunpack.c.h.b16 %v1090
    %v1275 = vunpack.c.l.b16 %v1091
    %v1276 = vunpack.c.h.b16 %v1091
    %v1277 = vpack.c.b16 %v1247, %v1245
    %v1278 = vpack.c.b16 %v1248, %v1246
    %v1279 = vpack.c.b16 %v1251, %v1249
    %v1280 = vpack.c.b16 %v1252, %v1250
    %v1281 = vpack.c.b16 %v1255, %v1253
    %v1282 = vpack.c.b16 %v1256, %v1254
    %v1283 = vpack.c.b16 %v1259, %v1257
    %v1284 = vpack.c.b16 %v1260, %v1258
    %v1285 = vpack.c.b16 %v1263, %v1261
    %v1286 = vpack.c.b16 %v1264, %v1262
    %v1287 = vpack.c.b16 %v1267, %v1265
    %v1288 = vpack.c.b16 %v1268, %v1266
    %v1289 = vpack.c.b16 %v1271, %v1269
    %v1290 = vpack.c.b16 %v1272, %v1270
    %v1291 = vpack.c.b16 %v1275, %v1273
    %v1292 = vpack.c.b16 %v1276, %v1274
    %1309 = vmatprep.subr.bf16.mxu0 %v1278
    %1310 = vmatpush1.bf16.msra.mxu0 %v1277
    %1311 = vmatprep.subr.bf16.mxu0 %v1280
    %1312 = vmatpush1.bf16.msra.mxu0 %v1279
    %1313 = vmatprep.subr.bf16.mxu0 %v1282
    %1314 = vmatpush1.bf16.msra.mxu0 %v1281
    %1315 = vmatprep.subr.bf16.mxu0 %v1284
    %1316 = vmatpush1.bf16.msra.mxu0 %v1283
    %1317 = vmatprep.subr.bf16.mxu0 %v1286
    %1318 = vmatpush1.bf16.msra.mxu0 %v1285
    %1319 = vmatprep.subr.bf16.mxu0 %v1288
    %1320 = vmatpush1.bf16.msra.mxu0 %v1287
    %1321 = vmatprep.subr.bf16.mxu0 %v1290
    %1322 = vmatpush1.bf16.msra.mxu0 %v1289
    %1323 = vmatprep.subr.bf16.mxu0 %v1292
    %1324 = vmatpush1.bf16.msra.mxu0 %v1291
    %1325 = vmatprep.subr.bf16.mxu0 0
    %1326 = vmatpush1.bf16.msra.mxu0 0
    %1327 = vmatprep.subr.bf16.mxu0 0
    %1328 = vmatpush1.bf16.msra.mxu0 0
    %1329 = vmatprep.subr.bf16.mxu0 0
    %1330 = vmatpush1.bf16.msra.mxu0 0
    %1331 = vmatprep.subr.bf16.mxu0 0
    %1332 = vmatpush1.bf16.msra.mxu0 0
    %1333 = vmatprep.subr.bf16.mxu0 0
    %1334 = vmatpush1.bf16.msra.mxu0 0
    %1335 = vmatprep.subr.bf16.mxu0 0
    %1336 = vmatpush1.bf16.msra.mxu0 0
    %1337 = vmatprep.subr.bf16.mxu0 0
    %1338 = vmatpush1.bf16.msra.mxu0 0
    %1339 = vmatprep.subr.bf16.mxu0 0
    %1340 = vmatpush1.bf16.msra.mxu0 0
    %1341 = vmatprep.mubr.bf16.mxu0 0
    %1342 = vmatmul.mubr.bf16.gmra.mrb[0].mxu0 %v1073
    %v1343 = vpop.f32.mrb[0].mxu0
    %v1344 = vadd.f32 %v1223, %v1343
    %v1345 = vpop.f32.mrb[0].mxu0
    %v1346 = vadd.f32 %v1225, %v1345
    %v1347 = vpop.f32.mrb[0].mxu0
    %v1348 = vpop.f32.mrb[0].mxu0
    %1349 = vdwg.mxu0
    %v1350 = vld [vmem:[%s12] sm:$0x3]
    %v1352 = vlaneseq
    %v1353 = vshrl.u32 %v1352, 7
    %v1354 = vsub.s32 0, %v1353
    %v1355 = vrot.slane %v1350, %v1354
    %v1356 = vlaneseq
    %v1357 = vshrl.u32 %v1356, 7
    %v1358 = vsub.s32 1, %v1357
    %v1359 = vrot.slane %v1350, %v1358
    %v1362 = vadd.f32 %v1344, %v1355
    %v1363 = vadd.f32 %v1346, %v1359
    %v1364 = vmax.f32 %v1362, 0.0
    %v1365 = vmax.f32 %v1363, 0.0
    %v1366 = vpack.c.bf16 %v1364, %v1364
    %v1367 = vpack.c.bf16 %v1365, %v1365
    %v1368 = vld [vmem:[#allocation16] sm:$0xf]
    %v1369 = vld [vmem:[#allocation16 + $0x4] sm:$0xf]
    %v1370 = vld [vmem:[#allocation16 + $0x8] sm:$0xf]
    %v1371 = vld [vmem:[#allocation16 + $0xc] sm:$0xf]
    %v1372 = vld [vmem:[#allocation16 + $0x10] sm:$0xf]
    %v1373 = vld [vmem:[#allocation16 + $0x14] sm:$0xf]
    %v1374 = vld [vmem:[#allocation16 + $0x18] sm:$0xf]
    %v1375 = vld [vmem:[#allocation16 + $0x1c] sm:$0xf]
    %v1376 = vld [vmem:[#allocation16 + $0x20] sm:$0xf]
    %v1377 = vld [vmem:[#allocation16 + $0x24] sm:$0xf]
    %v1378 = vld [vmem:[#allocation16 + $0x28] sm:$0xf]
    %v1379 = vld [vmem:[#allocation16 + $0x2c] sm:$0xf]
    %v1380 = vld [vmem:[#allocation16 + $0x30] sm:$0xf]
    %v1381 = vld [vmem:[#allocation16 + $0x34] sm:$0xf]
    %v1382 = vld [vmem:[#allocation16 + $0x38] sm:$0xf]
    %v1383 = vld [vmem:[#allocation16 + $0x3c] sm:$0xf]
    %v1384 = vld [vmem:[#allocation16 + $0x40] sm:$0xf]
    %v1385 = vld [vmem:[#allocation16 + $0x44] sm:$0xf]
    %v1386 = vld [vmem:[#allocation16 + $0x48] sm:$0xf]
    %v1387 = vld [vmem:[#allocation16 + $0x4c] sm:$0xf]
    %v1388 = vld [vmem:[#allocation16 + $0x50] sm:$0xf]
    %v1389 = vld [vmem:[#allocation16 + $0x54] sm:$0xf]
    %v1390 = vld [vmem:[#allocation16 + $0x58] sm:$0xf]
    %v1391 = vld [vmem:[#allocation16 + $0x5c] sm:$0xf]
    %v1392 = vld [vmem:[#allocation16 + $0x60] sm:$0xf]
    %v1393 = vld [vmem:[#allocation16 + $0x64] sm:$0xf]
    %v1394 = vld [vmem:[#allocation16 + $0x68] sm:$0xf]
    %v1395 = vld [vmem:[#allocation16 + $0x6c] sm:$0xf]
    %v1396 = vld [vmem:[#allocation16 + $0x70] sm:$0xf]
    %v1397 = vld [vmem:[#allocation16 + $0x74] sm:$0xf]
    %v1398 = vld [vmem:[#allocation16 + $0x78] sm:$0xf]
    %v1399 = vld [vmem:[#allocation16 + $0x7c] sm:$0xf]
    %v1400 = vld [vmem:[%s14] sm:$0x1]
    %v1402 = vlaneseq
    %v1403 = vshrl.u32 %v1402, 7
    %v1404 = vsub.s32 0, %v1403
    %v1405 = vrot.slane %v1400, %v1404
    %v1439 = vunpack.c.l.b16 %v1368
    %v1440 = vunpack.c.l.b16 %v1369
    %v1441 = vunpack.c.l.b16 %v1370
    %v1442 = vunpack.c.l.b16 %v1371
    %v1443 = vunpack.c.l.b16 %v1372
    %v1444 = vunpack.c.l.b16 %v1373
    %v1445 = vunpack.c.l.b16 %v1374
    %v1446 = vunpack.c.l.b16 %v1375
    %v1447 = vunpack.c.l.b16 %v1376
    %v1448 = vunpack.c.l.b16 %v1377
    %v1449 = vunpack.c.l.b16 %v1378
    %v1450 = vunpack.c.l.b16 %v1379
    %v1451 = vunpack.c.l.b16 %v1380
    %v1452 = vunpack.c.l.b16 %v1381
    %v1453 = vunpack.c.l.b16 %v1382
    %v1454 = vunpack.c.l.b16 %v1383
    %v1455 = vunpack.c.l.b16 %v1384
    %v1456 = vunpack.c.l.b16 %v1385
    %v1457 = vunpack.c.l.b16 %v1386
    %v1458 = vunpack.c.l.b16 %v1387
    %v1459 = vunpack.c.l.b16 %v1388
    %v1460 = vunpack.c.l.b16 %v1389
    %v1461 = vunpack.c.l.b16 %v1390
    %v1462 = vunpack.c.l.b16 %v1391
    %v1463 = vunpack.c.l.b16 %v1392
    %v1464 = vunpack.c.l.b16 %v1393
    %v1465 = vunpack.c.l.b16 %v1394
    %v1466 = vunpack.c.l.b16 %v1395
    %v1467 = vunpack.c.l.b16 %v1396
    %v1468 = vunpack.c.l.b16 %v1397
    %v1469 = vunpack.c.l.b16 %v1398
    %v1470 = vunpack.c.l.b16 %v1399
    %v1471 = vpack.c.b16 %v1440, %v1439
    %v1472 = vpack.c.b16 %v1442, %v1441
    %v1473 = vpack.c.b16 %v1444, %v1443
    %v1474 = vpack.c.b16 %v1446, %v1445
    %v1475 = vpack.c.b16 %v1448, %v1447
    %v1476 = vpack.c.b16 %v1450, %v1449
    %v1477 = vpack.c.b16 %v1452, %v1451
    %v1478 = vpack.c.b16 %v1454, %v1453
    %v1479 = vpack.c.b16 %v1456, %v1455
    %v1480 = vpack.c.b16 %v1458, %v1457
    %v1481 = vpack.c.b16 %v1460, %v1459
    %v1482 = vpack.c.b16 %v1462, %v1461
    %v1483 = vpack.c.b16 %v1464, %v1463
    %v1484 = vpack.c.b16 %v1466, %v1465
    %v1485 = vpack.c.b16 %v1468, %v1467
    %v1486 = vpack.c.b16 %v1470, %v1469
    %1503 = vmatprep.subr.bf16.mxu0 0
    %1504 = vmatpush1.bf16.msra.mxu0 %v1471
    %1505 = vmatprep.subr.bf16.mxu0 0
    %1506 = vmatpush1.bf16.msra.mxu0 %v1472
    %1507 = vmatprep.subr.bf16.mxu0 0
    %1508 = vmatpush1.bf16.msra.mxu0 %v1473
    %1509 = vmatprep.subr.bf16.mxu0 0
    %1510 = vmatpush1.bf16.msra.mxu0 %v1474
    %1511 = vmatprep.subr.bf16.mxu0 0
    %1512 = vmatpush1.bf16.msra.mxu0 %v1475
    %1513 = vmatprep.subr.bf16.mxu0 0
    %1514 = vmatpush1.bf16.msra.mxu0 %v1476
    %1515 = vmatprep.subr.bf16.mxu0 0
    %1516 = vmatpush1.bf16.msra.mxu0 %v1477
    %1517 = vmatprep.subr.bf16.mxu0 0
    %1518 = vmatpush1.bf16.msra.mxu0 %v1478
    %1519 = vmatprep.subr.bf16.mxu0 0
    %1520 = vmatpush1.bf16.msra.mxu0 %v1479
    %1521 = vmatprep.subr.bf16.mxu0 0
    %1522 = vmatpush1.bf16.msra.mxu0 %v1480
    %1523 = vmatprep.subr.bf16.mxu0 0
    %1524 = vmatpush1.bf16.msra.mxu0 %v1481
    %1525 = vmatprep.subr.bf16.mxu0 0
    %1526 = vmatpush1.bf16.msra.mxu0 %v1482
    %1527 = vmatprep.subr.bf16.mxu0 0
    %1528 = vmatpush1.bf16.msra.mxu0 %v1483
    %1529 = vmatprep.subr.bf16.mxu0 0
    %1530 = vmatpush1.bf16.msra.mxu0 %v1484
    %1531 = vmatprep.subr.bf16.mxu0 0
    %1532 = vmatpush1.bf16.msra.mxu0 %v1485
    %1533 = vmatprep.subr.bf16.mxu0 0
    %1534 = vmatpush1.bf16.msra.mxu0 %v1486
    %1535 = vmatprep.mubr.bf16.mxu0 %v1367
    %1536 = vmatmul.mubr.bf16.gmra.mrb[0].mxu0 %v1366
    %v1537 = vpop.f32.mrb[0].mxu0
    %v1538 = vadd.f32 %v1405, %v1537
    %v1539 = vpop.f32.mrb[0].mxu0
    %v1540 = vpop.f32.mrb[0].mxu0
    %v1541 = vpop.f32.mrb[0].mxu0
    %1542 = vdwg.mxu0
    %1543 = vst [vmem:[#allocation17] sm:$0xff] %v1538
    // Predicated region
    $region98: #{tpu_custom_call.1} parent=1 // pred_check
      _
    $region99: #{tpu_custom_call.1} parent=1 // pred_check_branch
      %1545 = sbr.rel (0) target = $region101
    $region100: #{tpu_custom_call.1} parent=1 // pred_region
      %s1547 = ssub.s32 128, 128
      %1548 = vsyncadd [#allocation4], %s1547
      %s1550 = sshll.u32 [#allocation17], 4
      %s1551 = int_to_ptr.vmem [resolvable:$true] %s1550
      %1553 = dma.vmem_to_hbm [thread:$0]  %s1551, 128, %s15, [#allocation4]
    $region101: #{tpu_custom_call.1} parent=1 // pred_fallthru
      _
    // Predicated region
    $region102: #{tpu_custom_call.1} parent=1 // pred_check
      _
    $region103: #{tpu_custom_call.1} parent=1 // pred_check_branch
      %1555 = sbr.rel (0) target = $region105
    $region104: #{tpu_custom_call.1} parent=1 // pred_region
      %1556 = dma.done [#allocation4], 128
    $region105: #{tpu_custom_call.1} parent=1 // pred_fallthru
      _
    %1557 = vsyncpa [#allocation3], 1
    %1558 = vsyncpa [#allocation6], 1
    %1559 = vsyncpa [#allocation9], 1
    %1560 = vsyncpa [#allocation12], 1
    %1561 = vsyncpa [#allocation15], 1
    %1562 = vsyncpa [#allocation4], 1

</llo_original>
